<compile_context>
chip_gen: v5e
topology: v5e:2x2
jax: 0.10.0
libtpu: 0.0.40
codegen_flags: <defaults>
</compile_context>

<pallas_src>
import functools

import jax
import jax.numpy as jnp
from jax.experimental import pallas as pl
from jax.experimental.pallas import tpu as pltpu

# ---------------- config (mirrors the TANR config object) ----------------
WORD_NUM = 100
EMB_DIM = 32          # config.embedding_dim
NUM_FILTERS = 16      # config.num_filters
WINDOW = 3            # config.window_size
ATTN_DIM = 16         # config.attention_dim
CATEGORY_NUM = 10     # config.category_num (category_dense is NOT used in forward)
TITLE_LEN = 8
BATCH = 2
N_BROWSED = 4
N_CANDIDATE = 3


# ---------------- fused Pallas kernel ----------------
def _tanr_fused_kernel(titles_ref, emb_ref, wc_ref, bc_ref,
                       nw1_ref, nb1_ref, nw2_ref,
                       uw1_ref, ub1_ref, uw2_ref,
                       o_ref, *, batch, n_browsed, n_candidate, title_len):
    # titles_ref : (N*L, 1) int32   flattened word indices, N = B*(Nb+Nc)
    # emb_ref    : (V, E)           word embedding table
    # wc_ref     : (W*E, F)         im2col-flattened conv weight (torch w[f,0,w,e] -> row w*E+e, col f)
    # bc_ref     : (1, F)           conv bias
    # nw1_ref/nb1_ref/nw2_ref : (F, A)/(1, A)/(1, A)   news additive attention
    # uw1_ref/ub1_ref/uw2_ref : (F, A)/(1, A)/(1, A)   user additive attention
    # o_ref      : (B, Nc)          click scores
    b, nb, nc, l = batch, n_browsed, n_candidate, title_len
    n = b * (nb + nc)                 # total news items
    v, e = emb_ref.shape
    we, f = wc_ref.shape
    a = nw1_ref.shape[1]

    # ---- embedding lookup as a one-hot matmul (gather on the MXU) ----
    idx = titles_ref[...]                                             # (n*l, 1) int32
    vocab_iota = jax.lax.broadcasted_iota(jnp.int32, (n * l, v), 1)   # (n*l, v)
    onehot = (idx == vocab_iota).astype(jnp.float32)
    x = jnp.dot(onehot, emb_ref[...], preferred_element_type=jnp.float32)   # (n*l, e)
    # TODO(synk): embedding dropout (F.dropout) omitted -> identity (inference semantics).

    # ---- Conv2d(1, F, (W, E), padding=(1, 0)) as ONE im2col matmul ----
    x3 = x.reshape(n, l, e)
    zrow = jnp.zeros((n, 1, e), jnp.float32)
    x_prev = jnp.concatenate([zrow, x3[:, :l - 1, :]], axis=1)        # token l-1 (zero-padded)
    x_next = jnp.concatenate([x3[:, 1:, :], zrow], axis=1)            # token l+1 (zero-padded)
    x_win = jnp.concatenate([x_prev, x3, x_next], axis=-1)            # (n, l, W*e)
    c2 = jnp.dot(x_win.reshape(n * l, we), wc_ref[...],
                 preferred_element_type=jnp.float32) + bc_ref[...]    # (n*l, f)
    c2 = jnp.maximum(c2, 0.0)                                         # ReLU
    # TODO(synk): post-conv F.dropout omitted -> identity (inference semantics).

    # ---- news additive attention (flat 2-D matmuls, MXU pooling) ----
    h = jnp.tanh(jnp.dot(c2, nw1_ref[...], preferred_element_type=jnp.float32)
                 + nb1_ref[...])                                      # (n*l, a)
    s = jnp.sum(h.reshape(n, l, a) * nw2_ref[...], axis=-1)           # (n, l)
    s = s - jnp.max(s, axis=1, keepdims=True)                         # (bias of A->1 Linear cancels)
    es = jnp.exp(s)
    alpha = es * pl.reciprocal(jnp.sum(es, axis=1, keepdims=True), approx=True)
    c3 = c2.reshape(n, l, f)
    news_r = jnp.einsum('nkl,nlf->nkf', alpha[:, None, :], c3,
                        preferred_element_type=jnp.float32).reshape(n, f)   # (n, f)

    # ---- split browsed / candidate representations ----
    news_r3 = news_r.reshape(b, nb + nc, f)
    browsed_r = news_r3[:, :nb, :]                                    # (b, nb, f)
    candidate_r = news_r3[:, nb:, :]                                  # (b, nc, f)

    # ---- user additive attention over browsed news ----
    hu = jnp.tanh(jnp.dot(browsed_r.reshape(b * nb, f), uw1_ref[...],
                          preferred_element_type=jnp.float32) + ub1_ref[...])   # (b*nb, a)
    su = jnp.sum(hu.reshape(b, nb, a) * uw2_ref[...], axis=-1)        # (b, nb)
    su = su - jnp.max(su, axis=1, keepdims=True)
    eu = jnp.exp(su)
    au = eu * pl.reciprocal(jnp.sum(eu, axis=1, keepdims=True), approx=True)
    user_r = jnp.einsum('bkn,bnf->bkf', au[:, None, :], browsed_r,
                        preferred_element_type=jnp.float32)           # (b, 1, f)

    # ---- click score: torch.bmm(user_r, candidate_r^T) ----
    o_ref[...] = jnp.einsum('bkf,bcf->bkc', user_r, candidate_r,
                            preferred_element_type=jnp.float32)[:, 0, :]   # (b, nc)


# ---------------- wrapper ----------------
def tanr_forward(params, browsed_news, candidate_news):
    """browsed_news: (B, Nb, L) int32, candidate_news: (B, Nc, L) int32 -> (B, Nc) f32."""
    b, nb, l = browsed_news.shape
    nc = candidate_news.shape[1]
    n = b * (nb + nc)

    # Only integer-index glue remains outside the kernel (trivial, layout-only).
    titles = jnp.concatenate([browsed_news, candidate_news], axis=1)
    titles = titles.reshape(n * l, 1).astype(jnp.int32)

    # conv_w is stored (W, E, F) (torch weight[f,0,w,e] -> conv_w[w,e,f]);
    # im2col-flatten so rows 0..E-1 are w=0, E..2E-1 are w=1, etc.
    wc_flat = params['conv_w'].reshape(WINDOW * EMB_DIM, NUM_FILTERS)

    kernel = functools.partial(_tanr_fused_kernel,
                               batch=b, n_browsed=nb, n_candidate=nc, title_len=l)
    vmem = pl.BlockSpec(memory_space=pltpu.MemorySpace.VMEM)

    return pl.pallas_call(
        kernel,
        out_shape=jax.ShapeDtypeStruct((b, nc), jnp.float32),
        in_specs=[vmem] * 10,
        out_specs=vmem,
    )(titles, params['word_embedding'], wc_flat, params['conv_b'],
      params['news_attn_w1'], params['news_attn_b1'], params['news_attn_w2'],
      params['user_attn_w1'], params['user_attn_b1'], params['user_attn_w2'])


def init_params(key):
    ks = jax.random.split(key, 11)
    scale = 0.1
    emb = jax.random.normal(ks[0], (WORD_NUM, EMB_DIM), jnp.float32) * scale
    emb = emb.at[0].set(0.0)  # padding_idx=0
    params = {
        'word_embedding': emb,
        # Conv2d(1, F, (W, E)) weight: torch [F, 1, W, E] -> stored as [W, E, F]
        'conv_w': jax.random.normal(ks[1], (WINDOW, EMB_DIM, NUM_FILTERS), jnp.float32) * scale,
        'conv_b': jax.random.normal(ks[2], (1, NUM_FILTERS), jnp.float32) * scale,
        # NewsEncoder attention (Linear(F, A), Linear(A, 1))
        'news_attn_w1': jax.random.normal(ks[3], (NUM_FILTERS, ATTN_DIM), jnp.float32) * scale,
        'news_attn_b1': jax.random.normal(ks[4], (1, ATTN_DIM), jnp.float32) * scale,
        'news_attn_w2': jax.random.normal(ks[5], (1, ATTN_DIM), jnp.float32) * scale,
        # UserEncoder attention
        'user_attn_w1': jax.random.normal(ks[6], (NUM_FILTERS, ATTN_DIM), jnp.float32) * scale,
        'user_attn_b1': jax.random.normal(ks[7], (1, ATTN_DIM), jnp.float32) * scale,
        'user_attn_w2': jax.random.normal(ks[8], (1, ATTN_DIM), jnp.float32) * scale,
        # category_dense exists in __init__ but is unused in TANR.forward
        'category_dense_w': jax.random.normal(ks[9], (NUM_FILTERS, CATEGORY_NUM), jnp.float32) * scale,
        'category_dense_b': jax.random.normal(ks[10], (1, CATEGORY_NUM), jnp.float32) * scale,
    }
    return params


if __name__ == "__main__":
    key = jax.random.PRNGKey(0)
    pkey, bkey, ckey = jax.random.split(key, 3)
    params = init_params(pkey)
    browsed = jax.random.randint(bkey, (BATCH, N_BROWSED, TITLE_LEN), 0, WORD_NUM,
                                 dtype=jnp.int32)
    candidate = jax.random.randint(ckey, (BATCH, N_CANDIDATE, TITLE_LEN), 0, WORD_NUM,
                                   dtype=jnp.int32)

    click_prob = jax.jit(tanr_forward)(params, browsed, candidate)
    click_prob = jax.block_until_ready(click_prob)
    assert click_prob.shape == (BATCH, N_CANDIDATE)
    assert click_prob.dtype == jnp.float32
    print("KERNEL_OK")
</pallas_src>

<mosaic_0001>
module attributes {stable_mosaic.version = 11 : i64} {
  func.func @_tanr_fused_kernel(%arg0: memref<112x1xi32, #tpu.memory_space<vmem>>, %arg1: memref<100x32xf32, #tpu.memory_space<vmem>>, %arg2: memref<96x16xf32, #tpu.memory_space<vmem>>, %arg3: memref<1x16xf32, #tpu.memory_space<vmem>>, %arg4: memref<16x16xf32, #tpu.memory_space<vmem>>, %arg5: memref<1x16xf32, #tpu.memory_space<vmem>>, %arg6: memref<1x16xf32, #tpu.memory_space<vmem>>, %arg7: memref<16x16xf32, #tpu.memory_space<vmem>>, %arg8: memref<1x16xf32, #tpu.memory_space<vmem>>, %arg9: memref<1x16xf32, #tpu.memory_space<vmem>>, %arg10: memref<2x3xf32, #tpu.memory_space<vmem>>) attributes {dimension_semantics = [], scalar_prefetch = 0 : i64, scratch_operands = 0 : i64, tpu.core_type = #tpu.core_type<tc>} {
    %c0 = arith.constant 0 : index
    %c0_0 = arith.constant 0 : index
    %0 = vector.load %arg0[%c0, %c0_0] : memref<112x1xi32, #tpu.memory_space<vmem>>, vector<112x1xi32>
    %1 = tpu.iota {dimensions = array<i32: 1>} : vector<112x100xi32>
    %2 = vector.broadcast %0 : vector<112x1xi32> to vector<112x100xi32>
    %3 = arith.cmpi eq, %2, %1 : vector<112x100xi32>
    %4 = arith.extui %3 : vector<112x100xi1> to vector<112x100xi32>
    %5 = arith.sitofp %4 : vector<112x100xi32> to vector<112x100xf32>
    %c0_1 = arith.constant 0 : index
    %c0_2 = arith.constant 0 : index
    %6 = vector.load %arg1[%c0_1, %c0_2] : memref<100x32xf32, #tpu.memory_space<vmem>>, vector<100x32xf32>
    %cst = arith.constant dense<0.000000e+00> : vector<112x32xf32>
    %7 = tpu.matmul %5, %6, %cst {dimension_numbers = #tpu.dot_dimension_numbers<[1], [0], [0], [1], [0, 0, 1, 1], [], []>} : vector<112x100xf32>, vector<100x32xf32>, vector<112x32xf32> -> vector<112x32xf32>
    %8 = vector.shape_cast %7 : vector<112x32xf32> to vector<14x8x32xf32>
    %cst_3 = arith.constant 0.000000e+00 : f32
    %9 = vector.broadcast %cst_3 : f32 to vector<14x1x32xf32>
    %10 = vector.extract_strided_slice %8 {offsets = [0, 0, 0], sizes = [14, 7, 32], strides = [1, 1, 1]} : vector<14x8x32xf32> to vector<14x7x32xf32>
    %11 = tpu.concatenate %9, %10 in 1 : vector<14x1x32xf32>, vector<14x7x32xf32> -> vector<14x8x32xf32>
    %12 = vector.extract_strided_slice %8 {offsets = [0, 1, 0], sizes = [14, 7, 32], strides = [1, 1, 1]} : vector<14x8x32xf32> to vector<14x7x32xf32>
    %13 = tpu.concatenate %12, %9 in 1 : vector<14x7x32xf32>, vector<14x1x32xf32> -> vector<14x8x32xf32>
    %14 = tpu.concatenate %11, %8, %13 in 2 : vector<14x8x32xf32>, vector<14x8x32xf32>, vector<14x8x32xf32> -> vector<14x8x96xf32>
    %15 = vector.shape_cast %14 : vector<14x8x96xf32> to vector<112x96xf32>
    %c0_4 = arith.constant 0 : index
    %c0_5 = arith.constant 0 : index
    %16 = vector.load %arg2[%c0_4, %c0_5] : memref<96x16xf32, #tpu.memory_space<vmem>>, vector<96x16xf32>
    %cst_6 = arith.constant dense<0.000000e+00> : vector<112x16xf32>
    %17 = tpu.matmul %15, %16, %cst_6 {dimension_numbers = #tpu.dot_dimension_numbers<[1], [0], [0], [1], [0, 0, 1, 1], [], []>} : vector<112x96xf32>, vector<96x16xf32>, vector<112x16xf32> -> vector<112x16xf32>
    %c0_7 = arith.constant 0 : index
    %c0_8 = arith.constant 0 : index
    %18 = vector.load %arg3[%c0_7, %c0_8] : memref<1x16xf32, #tpu.memory_space<vmem>>, vector<1x16xf32>
    %19 = vector.broadcast %18 : vector<1x16xf32> to vector<112x16xf32>
    %20 = arith.addf %17, %19 : vector<112x16xf32>
    %cst_9 = arith.constant 0.000000e+00 : f32
    %21 = vector.broadcast %cst_9 : f32 to vector<112x16xf32>
    %22 = arith.maximumf %20, %21 : vector<112x16xf32>
    %c0_10 = arith.constant 0 : index
    %c0_11 = arith.constant 0 : index
    %23 = vector.load %arg4[%c0_10, %c0_11] : memref<16x16xf32, #tpu.memory_space<vmem>>, vector<16x16xf32>
    %cst_12 = arith.constant dense<0.000000e+00> : vector<112x16xf32>
    %24 = tpu.matmul %22, %23, %cst_12 {dimension_numbers = #tpu.dot_dimension_numbers<[1], [0], [0], [1], [0, 0, 1, 1], [], []>} : vector<112x16xf32>, vector<16x16xf32>, vector<112x16xf32> -> vector<112x16xf32>
    %c0_13 = arith.constant 0 : index
    %c0_14 = arith.constant 0 : index
    %25 = vector.load %arg5[%c0_13, %c0_14] : memref<1x16xf32, #tpu.memory_space<vmem>>, vector<1x16xf32>
    %26 = vector.broadcast %25 : vector<1x16xf32> to vector<112x16xf32>
    %27 = arith.addf %24, %26 : vector<112x16xf32>
    %28 = math.tanh %27 : vector<112x16xf32>
    %29 = vector.shape_cast %28 : vector<112x16xf32> to vector<14x8x16xf32>
    %c0_15 = arith.constant 0 : index
    %c0_16 = arith.constant 0 : index
    %30 = vector.load %arg6[%c0_15, %c0_16] : memref<1x16xf32, #tpu.memory_space<vmem>>, vector<1x16xf32>
    %31 = vector.shape_cast %30 : vector<1x16xf32> to vector<1x1x16xf32>
    %32 = vector.broadcast %31 : vector<1x1x16xf32> to vector<14x8x16xf32>
    %33 = arith.mulf %29, %32 : vector<14x8x16xf32>
    %cst_17 = arith.constant dense<0.000000e+00> : vector<14x8xf32>
    %34 = vector.multi_reduction <add>, %33, %cst_17 [2] : vector<14x8x16xf32> to vector<14x8xf32>
    %cst_18 = arith.constant dense<0xFF800000> : vector<14xf32>
    %35 = vector.multi_reduction <maximumf>, %34, %cst_18 [1] : vector<14x8xf32> to vector<14xf32>
    %36 = vector.shape_cast %35 : vector<14xf32> to vector<14x1xf32>
    %37 = vector.broadcast %36 : vector<14x1xf32> to vector<14x8xf32>
    %38 = arith.subf %34, %37 : vector<14x8xf32>
    %39 = math.exp %38 : vector<14x8xf32>
    %cst_19 = arith.constant dense<0.000000e+00> : vector<14xf32>
    %40 = vector.multi_reduction <add>, %39, %cst_19 [1] : vector<14x8xf32> to vector<14xf32>
    %41 = vector.shape_cast %40 : vector<14xf32> to vector<14x1xf32>
    %42 = tpu.reciprocal %41 {approx = true} : vector<14x1xf32> -> vector<14x1xf32>
    %43 = vector.broadcast %42 : vector<14x1xf32> to vector<14x8xf32>
    %44 = arith.mulf %39, %43 : vector<14x8xf32>
    %45 = vector.shape_cast %22 : vector<112x16xf32> to vector<14x8x16xf32>
    %46 = vector.shape_cast %44 : vector<14x8xf32> to vector<14x1x8xf32>
    "tpu.trace_start"() <{level = 10 : i32, message = "nkl,nlf->nkf"}> : () -> ()
    %cst_20 = arith.constant dense<0.000000e+00> : vector<14x1x16xf32>
    %47 = tpu.matmul %46, %45, %cst_20 {dimension_numbers = #tpu.dot_dimension_numbers<[2], [1], [1], [2], [0, 0, 0, 1, 1, 2], [0], [0]>} : vector<14x1x8xf32>, vector<14x8x16xf32>, vector<14x1x16xf32> -> vector<14x1x16xf32>
    "tpu.trace_stop"() : () -> ()
    %48 = vector.shape_cast %47 : vector<14x1x16xf32> to vector<14x16xf32>
    %49 = vector.shape_cast %48 : vector<14x16xf32> to vector<2x7x16xf32>
    %50 = vector.extract_strided_slice %49 {offsets = [0, 0, 0], sizes = [2, 4, 16], strides = [1, 1, 1]} : vector<2x7x16xf32> to vector<2x4x16xf32>
    %51 = vector.extract_strided_slice %49 {offsets = [0, 4, 0], sizes = [2, 3, 16], strides = [1, 1, 1]} : vector<2x7x16xf32> to vector<2x3x16xf32>
    %52 = vector.shape_cast %50 : vector<2x4x16xf32> to vector<8x16xf32>
    %c0_21 = arith.constant 0 : index
    %c0_22 = arith.constant 0 : index
    %53 = vector.load %arg7[%c0_21, %c0_22] : memref<16x16xf32, #tpu.memory_space<vmem>>, vector<16x16xf32>
    %cst_23 = arith.constant dense<0.000000e+00> : vector<8x16xf32>
    %54 = tpu.matmul %52, %53, %cst_23 {dimension_numbers = #tpu.dot_dimension_numbers<[1], [0], [0], [1], [0, 0, 1, 1], [], []>} : vector<8x16xf32>, vector<16x16xf32>, vector<8x16xf32> -> vector<8x16xf32>
    %c0_24 = arith.constant 0 : index
    %c0_25 = arith.constant 0 : index
    %55 = vector.load %arg8[%c0_24, %c0_25] : memref<1x16xf32, #tpu.memory_space<vmem>>, vector<1x16xf32>
    %56 = vector.broadcast %55 : vector<1x16xf32> to vector<8x16xf32>
    %57 = arith.addf %54, %56 : vector<8x16xf32>
    %58 = math.tanh %57 : vector<8x16xf32>
    %59 = vector.shape_cast %58 : vector<8x16xf32> to vector<2x4x16xf32>
    %c0_26 = arith.constant 0 : index
    %c0_27 = arith.constant 0 : index
    %60 = vector.load %arg9[%c0_26, %c0_27] : memref<1x16xf32, #tpu.memory_space<vmem>>, vector<1x16xf32>
    %61 = vector.shape_cast %60 : vector<1x16xf32> to vector<1x1x16xf32>
    %62 = vector.broadcast %61 : vector<1x1x16xf32> to vector<2x4x16xf32>
    %63 = arith.mulf %59, %62 : vector<2x4x16xf32>
    %cst_28 = arith.constant dense<0.000000e+00> : vector<2x4xf32>
    %64 = vector.multi_reduction <add>, %63, %cst_28 [2] : vector<2x4x16xf32> to vector<2x4xf32>
    %cst_29 = arith.constant dense<0xFF800000> : vector<2xf32>
    %65 = vector.multi_reduction <maximumf>, %64, %cst_29 [1] : vector<2x4xf32> to vector<2xf32>
    %66 = vector.shape_cast %65 : vector<2xf32> to vector<2x1xf32>
    %67 = vector.broadcast %66 : vector<2x1xf32> to vector<2x4xf32>
    %68 = arith.subf %64, %67 : vector<2x4xf32>
    %69 = math.exp %68 : vector<2x4xf32>
    %cst_30 = arith.constant dense<0.000000e+00> : vector<2xf32>
    %70 = vector.multi_reduction <add>, %69, %cst_30 [1] : vector<2x4xf32> to vector<2xf32>
    %71 = vector.shape_cast %70 : vector<2xf32> to vector<2x1xf32>
    %72 = tpu.reciprocal %71 {approx = true} : vector<2x1xf32> -> vector<2x1xf32>
    %73 = vector.broadcast %72 : vector<2x1xf32> to vector<2x4xf32>
    %74 = arith.mulf %69, %73 : vector<2x4xf32>
    %75 = vector.shape_cast %74 : vector<2x4xf32> to vector<2x1x4xf32>
    "tpu.trace_start"() <{level = 10 : i32, message = "bkn,bnf->bkf"}> : () -> ()
    %cst_31 = arith.constant dense<0.000000e+00> : vector<2x1x16xf32>
    %76 = tpu.matmul %75, %50, %cst_31 {dimension_numbers = #tpu.dot_dimension_numbers<[2], [1], [1], [2], [0, 0, 0, 1, 1, 2], [0], [0]>} : vector<2x1x4xf32>, vector<2x4x16xf32>, vector<2x1x16xf32> -> vector<2x1x16xf32>
    "tpu.trace_stop"() : () -> ()
    "tpu.trace_start"() <{level = 10 : i32, message = "bkf,bcf->bkc"}> : () -> ()
    %cst_32 = arith.constant dense<0.000000e+00> : vector<2x1x3xf32>
    %77 = tpu.matmul %76, %51, %cst_32 {dimension_numbers = #tpu.dot_dimension_numbers<[2], [2], [1], [1], [0, 0, 0, 1, 1, 1], [0], [0]>} : vector<2x1x16xf32>, vector<2x3x16xf32>, vector<2x1x3xf32> -> vector<2x1x3xf32>
    "tpu.trace_stop"() : () -> ()
    %78 = vector.shape_cast %77 : vector<2x1x3xf32> to vector<2x3xf32>
    %c0_33 = arith.constant 0 : index
    %c0_34 = arith.constant 0 : index
    %79 = vector.load %arg10[%c0_33, %c0_34] : memref<2x3xf32, #tpu.memory_space<vmem>>, vector<2x3xf32>
    tpu.vector_store %arg10[%c0_33, %c0_34], %78 {strides = array<i32>} : memref<2x3xf32, #tpu.memory_space<vmem>>, vector<2x3xf32>,
    return
  }
}

</mosaic_0001>

<llo_original>
// kernel: tanr_forward.1
$region0: #{tanr_forward.1}
  #allocation0 [shape = 'u32[]', space=smem, size = 0x4, offset = 0x4, fixed_abs, tag = 'smem constant byte address 0x4 - core index']
  #allocation1 [shape = 'u32[72,128]{1,0:T(1,128)}', space=vmem, size = 0x9000, scoped, tag = 'internal scratch']
  %s0 = inlined_call_operand.vmem [shape: s32[112,1], index: 0, kind: input, shape index: {}]
  %s1 = inlined_call_operand.vmem [shape: f32[100,32], index: 1, kind: input, shape index: {}]
  %s2 = inlined_call_operand.vmem [shape: f32[96,16], index: 2, kind: input, shape index: {}]
  %s3 = inlined_call_operand.vmem [shape: f32[1,16], index: 3, kind: input, shape index: {}]
  %s4 = inlined_call_operand.vmem [shape: f32[16,16], index: 4, kind: input, shape index: {}]
  %s5 = inlined_call_operand.vmem [shape: f32[1,16], index: 5, kind: input, shape index: {}]
  %s6 = inlined_call_operand.vmem [shape: f32[1,16], index: 6, kind: input, shape index: {}]
  %s7 = inlined_call_operand.vmem [shape: f32[16,16], index: 7, kind: input, shape index: {}]
  %s8 = inlined_call_operand.vmem [shape: f32[1,16], index: 8, kind: input, shape index: {}]
  %s9 = inlined_call_operand.vmem [shape: f32[1,16], index: 9, kind: input, shape index: {}]
  %s10 = inlined_call_operand.hbm [shape: f32[2,3], index: 10, kind: output, shape index: {}]
  %s11 = sld [smem:[#allocation0]]
  $region50: #{tanr_forward.1} parent=0
    _
  %s13 = ssub.s32 1, %s11
  %s14 = scalar_select 0, %s13, %s11
  $region1: #{tanr_forward.1} parent=0
    #allocation2 [shape = 'u8[1024]{0}', space=vmem, size = 0x400, scoped, tag = 'output window, operand 0, single buffered']
    #allocation3 [shape = 's32[1]{0}', space=sflag, size = 0x4, scoped, tag = 'scoped memory for tanr_forward.1']
    %15 = vsyncpa [#allocation3], 0
    // Predicated region
    $region2: #{tanr_forward.1} parent=1 // pred_check
      _
    $region3: #{tanr_forward.1} parent=1 // pred_check_branch
      %17 = sbr.rel (0) target = $region5
    $region4: #{tanr_forward.1} parent=1 // pred_region
      _
    $region5: #{tanr_forward.1} parent=1 // pred_fallthru
      _
    // Predicated region
    $region6: #{tanr_forward.1} parent=1 // pred_check
      _
    $region7: #{tanr_forward.1} parent=1 // pred_check_branch
      %19 = sbr.rel (0) target = $region9
    $region8: #{tanr_forward.1} parent=1 // pred_region
      _
    $region9: #{tanr_forward.1} parent=1 // pred_fallthru
      _
    // Predicated region
    $region10: #{tanr_forward.1} parent=1 // pred_check
      _
    $region11: #{tanr_forward.1} parent=1 // pred_check_branch
      %21 = sbr.rel (0) target = $region13
    $region12: #{tanr_forward.1} parent=1 // pred_region
      _
    $region13: #{tanr_forward.1} parent=1 // pred_fallthru
      _
    // Predicated region
    $region14: #{tanr_forward.1} parent=1 // pred_check
      _
    $region15: #{tanr_forward.1} parent=1 // pred_check_branch
      %23 = sbr.rel (0) target = $region17
    $region16: #{tanr_forward.1} parent=1 // pred_region
      _
    $region17: #{tanr_forward.1} parent=1 // pred_fallthru
      _
    // Predicated region
    $region18: #{tanr_forward.1} parent=1 // pred_check
      _
    $region19: #{tanr_forward.1} parent=1 // pred_check_branch
      %25 = sbr.rel (0) target = $region21
    $region20: #{tanr_forward.1} parent=1 // pred_region
      _
    $region21: #{tanr_forward.1} parent=1 // pred_fallthru
      _
    // Predicated region
    $region22: #{tanr_forward.1} parent=1 // pred_check
      _
    $region23: #{tanr_forward.1} parent=1 // pred_check_branch
      %27 = sbr.rel (0) target = $region25
    $region24: #{tanr_forward.1} parent=1 // pred_region
      _
    $region25: #{tanr_forward.1} parent=1 // pred_fallthru
      _
    // Predicated region
    $region26: #{tanr_forward.1} parent=1 // pred_check
      _
    $region27: #{tanr_forward.1} parent=1 // pred_check_branch
      %29 = sbr.rel (0) target = $region29
    $region28: #{tanr_forward.1} parent=1 // pred_region
      _
    $region29: #{tanr_forward.1} parent=1 // pred_fallthru
      _
    // Predicated region
    $region30: #{tanr_forward.1} parent=1 // pred_check
      _
    $region31: #{tanr_forward.1} parent=1 // pred_check_branch
      %31 = sbr.rel (0) target = $region33
    $region32: #{tanr_forward.1} parent=1 // pred_region
      _
    $region33: #{tanr_forward.1} parent=1 // pred_fallthru
      _
    // Predicated region
    $region34: #{tanr_forward.1} parent=1 // pred_check
      _
    $region35: #{tanr_forward.1} parent=1 // pred_check_branch
      %33 = sbr.rel (0) target = $region37
    $region36: #{tanr_forward.1} parent=1 // pred_region
      _
    $region37: #{tanr_forward.1} parent=1 // pred_fallthru
      _
    // Predicated region
    $region38: #{tanr_forward.1} parent=1 // pred_check
      _
    $region39: #{tanr_forward.1} parent=1 // pred_check_branch
      %35 = sbr.rel (0) target = $region41
    $region40: #{tanr_forward.1} parent=1 // pred_region
      _
    $region41: #{tanr_forward.1} parent=1 // pred_fallthru
      _
    %v36 = vld [vmem:[%s0] sm:$0xff]
    %v37 = vld [vmem:[%s0 + $0x8] sm:$0xff]
    %v38 = vld [vmem:[%s0 + $0x10] sm:$0xff]
    %v39 = vld [vmem:[%s0 + $0x18] sm:$0xff]
    %v40 = vld [vmem:[%s0 + $0x20] sm:$0xff]
    %v41 = vld [vmem:[%s0 + $0x28] sm:$0xff]
    %v42 = vld [vmem:[%s0 + $0x30] sm:$0xff]
    %v43 = vld [vmem:[%s0 + $0x38] sm:$0xff]
    %v44 = vld [vmem:[%s0 + $0x40] sm:$0xff]
    %v45 = vld [vmem:[%s0 + $0x48] sm:$0xff]
    %v46 = vld [vmem:[%s0 + $0x50] sm:$0xff]
    %v47 = vld [vmem:[%s0 + $0x58] sm:$0xff]
    %v48 = vld [vmem:[%s0 + $0x60] sm:$0xff]
    %v49 = vld [vmem:[%s0 + $0x68] sm:$0xff]
    %v50 = vlaneseq
    %v51 = vand.u32 %v50, 127
    %52 = vset.pattern.permute.xlu0 0
    %53 = vperm.xlu0 %52, %v36
    %v54 = vpop.permute.xlu0 %53
    %55 = vset.pattern.permute.xlu0 0
    %56 = vperm.xlu0 %55, %v37
    %v57 = vpop.permute.xlu0 %56
    %58 = vset.pattern.permute.xlu0 0
    %59 = vperm.xlu0 %58, %v38
    %v60 = vpop.permute.xlu0 %59
    %61 = vset.pattern.permute.xlu0 0
    %62 = vperm.xlu0 %61, %v39
    %v63 = vpop.permute.xlu0 %62
    %64 = vset.pattern.permute.xlu0 0
    %65 = vperm.xlu0 %64, %v40
    %v66 = vpop.permute.xlu0 %65
    %67 = vset.pattern.permute.xlu0 0
    %68 = vperm.xlu0 %67, %v41
    %v69 = vpop.permute.xlu0 %68
    %70 = vset.pattern.permute.xlu0 0
    %71 = vperm.xlu0 %70, %v42
    %v72 = vpop.permute.xlu0 %71
    %73 = vset.pattern.permute.xlu0 0
    %74 = vperm.xlu0 %73, %v43
    %v75 = vpop.permute.xlu0 %74
    %76 = vset.pattern.permute.xlu0 0
    %77 = vperm.xlu0 %76, %v44
    %v78 = vpop.permute.xlu0 %77
    %79 = vset.pattern.permute.xlu0 0
    %80 = vperm.xlu0 %79, %v45
    %v81 = vpop.permute.xlu0 %80
    %82 = vset.pattern.permute.xlu0 0
    %83 = vperm.xlu0 %82, %v46
    %v84 = vpop.permute.xlu0 %83
    %85 = vset.pattern.permute.xlu0 0
    %86 = vperm.xlu0 %85, %v47
    %v87 = vpop.permute.xlu0 %86
    %88 = vset.pattern.permute.xlu0 0
    %89 = vperm.xlu0 %88, %v48
    %v90 = vpop.permute.xlu0 %89
    %91 = vset.pattern.permute.xlu0 0
    %92 = vperm.xlu0 %91, %v49
    %v93 = vpop.permute.xlu0 %92
    %vm94 = vcmp.eq.s32.totalorder %v54, %v51
    %vm95 = vcmp.eq.s32.totalorder %v57, %v51
    %vm96 = vcmp.eq.s32.totalorder %v60, %v51
    %vm97 = vcmp.eq.s32.totalorder %v63, %v51
    %vm98 = vcmp.eq.s32.totalorder %v66, %v51
    %vm99 = vcmp.eq.s32.totalorder %v69, %v51
    %vm100 = vcmp.eq.s32.totalorder %v72, %v51
    %vm101 = vcmp.eq.s32.totalorder %v75, %v51
    %vm102 = vcmp.eq.s32.totalorder %v78, %v51
    %vm103 = vcmp.eq.s32.totalorder %v81, %v51
    %vm104 = vcmp.eq.s32.totalorder %v84, %v51
    %vm105 = vcmp.eq.s32.totalorder %v87, %v51
    %vm106 = vcmp.eq.s32.totalorder %v90, %v51
    %vm107 = vcmp.eq.s32.totalorder %v93, %v51
    %v108 = vsel %vm94, 1, 0
    %v109 = vsel %vm95, 1, 0
    %v110 = vsel %vm96, 1, 0
    %v111 = vsel %vm97, 1, 0
    %v112 = vsel %vm98, 1, 0
    %v113 = vsel %vm99, 1, 0
    %v114 = vsel %vm100, 1, 0
    %v115 = vsel %vm101, 1, 0
    %v116 = vsel %vm102, 1, 0
    %v117 = vsel %vm103, 1, 0
    %v118 = vsel %vm104, 1, 0
    %v119 = vsel %vm105, 1, 0
    %v120 = vsel %vm106, 1, 0
    %v121 = vsel %vm107, 1, 0
    %v122 = vcvt.s32.f32 %v108
    %v123 = vcvt.s32.f32 %v109
    %v124 = vcvt.s32.f32 %v110
    %v125 = vcvt.s32.f32 %v111
    %v126 = vcvt.s32.f32 %v112
    %v127 = vcvt.s32.f32 %v113
    %v128 = vcvt.s32.f32 %v114
    %v129 = vcvt.s32.f32 %v115
    %v130 = vcvt.s32.f32 %v116
    %v131 = vcvt.s32.f32 %v117
    %v132 = vcvt.s32.f32 %v118
    %v133 = vcvt.s32.f32 %v119
    %v134 = vcvt.s32.f32 %v120
    %v135 = vcvt.s32.f32 %v121
    %v136 = vld [vmem:[%s1] sm:$0xff]
    %v137 = vld [vmem:[%s1 + $0x8] sm:$0xff]
    %v138 = vld [vmem:[%s1 + $0x10] sm:$0xff]
    %v139 = vld [vmem:[%s1 + $0x18] sm:$0xff]
    %v140 = vld [vmem:[%s1 + $0x20] sm:$0xff]
    %v141 = vld [vmem:[%s1 + $0x28] sm:$0xff]
    %v142 = vld [vmem:[%s1 + $0x30] sm:$0xff]
    %v143 = vld [vmem:[%s1 + $0x38] sm:$0xff]
    %v144 = vld [vmem:[%s1 + $0x40] sm:$0xff]
    %v145 = vld [vmem:[%s1 + $0x48] sm:$0xff]
    %v146 = vld [vmem:[%s1 + $0x50] sm:$0xff]
    %v147 = vld [vmem:[%s1 + $0x58] sm:$0xff]
    %v148 = vld [vmem:[%s1 + $0x60] sm:$0xf]
    %vm149 = vcmask 818176
    %v151 = vsel %vm149, %v122, 0
    %v154 = vsel %vm149, %v123, 0
    %v157 = vsel %vm149, %v124, 0
    %v160 = vsel %vm149, %v125, 0
    %v163 = vsel %vm149, %v126, 0
    %v166 = vsel %vm149, %v127, 0
    %v169 = vsel %vm149, %v128, 0
    %v172 = vsel %vm149, %v129, 0
    %v175 = vsel %vm149, %v130, 0
    %v178 = vsel %vm149, %v131, 0
    %v181 = vsel %vm149, %v132, 0
    %v184 = vsel %vm149, %v133, 0
    %v187 = vsel %vm149, %v134, 0
    %v190 = vsel %vm149, %v135, 0
    %vm192 = vcmask 1043456
    %v194 = vsel %vm192, %v148, 0
    %196 = vmatpush.msra.mxu0 0.0
    %197 = vmatpush.msra.mxu0 0.0
    %198 = vmatpush.msra.mxu0 0.0
    %199 = vmatpush.msra.mxu0 %v194
    %200 = vmatpush.msra.mxu0 %v147
    %201 = vmatpush.msra.mxu0 %v146
    %202 = vmatpush.msra.mxu0 %v145
    %203 = vmatpush.msra.mxu0 %v144
    %204 = vmatpush.msra.mxu0 %v143
    %205 = vmatpush.msra.mxu0 %v142
    %206 = vmatpush.msra.mxu0 %v141
    %207 = vmatpush.msra.mxu0 %v140
    %208 = vmatpush.msra.mxu0 %v139
    %209 = vmatpush.msra.mxu0 %v138
    %210 = vmatpush.msra.mxu0 %v137
    %211 = vmatpush.msra.mxu0 %v136
    %212 = vmatmul.f32.gmra.mxu0 %v151
    %v213 = vpop.f32.mrf.mxu0
    %v214 = vadd.f32 0.0, %v213
    %215 = vmatmul.f32.gmra.mxu0 %v154
    %v216 = vpop.f32.mrf.mxu0
    %v217 = vadd.f32 0.0, %v216
    %218 = vmatmul.f32.gmra.mxu0 %v157
    %v219 = vpop.f32.mrf.mxu0
    %v220 = vadd.f32 0.0, %v219
    %221 = vmatmul.f32.gmra.mxu0 %v160
    %v222 = vpop.f32.mrf.mxu0
    %v223 = vadd.f32 0.0, %v222
    %224 = vmatmul.f32.gmra.mxu0 %v163
    %v225 = vpop.f32.mrf.mxu0
    %v226 = vadd.f32 0.0, %v225
    %227 = vmatmul.f32.gmra.mxu0 %v166
    %v228 = vpop.f32.mrf.mxu0
    %v229 = vadd.f32 0.0, %v228
    %230 = vmatmul.f32.gmra.mxu0 %v169
    %v231 = vpop.f32.mrf.mxu0
    %v232 = vadd.f32 0.0, %v231
    %233 = vmatmul.f32.gmra.mxu0 %v172
    %v234 = vpop.f32.mrf.mxu0
    %v235 = vadd.f32 0.0, %v234
    %236 = vmatmul.f32.gmra.mxu0 %v175
    %v237 = vpop.f32.mrf.mxu0
    %v238 = vadd.f32 0.0, %v237
    %239 = vmatmul.f32.gmra.mxu0 %v178
    %v240 = vpop.f32.mrf.mxu0
    %v241 = vadd.f32 0.0, %v240
    %242 = vmatmul.f32.gmra.mxu0 %v181
    %v243 = vpop.f32.mrf.mxu0
    %v244 = vadd.f32 0.0, %v243
    %245 = vmatmul.f32.gmra.mxu0 %v184
    %v246 = vpop.f32.mrf.mxu0
    %v247 = vadd.f32 0.0, %v246
    %248 = vmatmul.f32.gmra.mxu0 %v187
    %v249 = vpop.f32.mrf.mxu0
    %v250 = vadd.f32 0.0, %v249
    %251 = vmatmul.f32.gmra.mxu0 %v190
    %v252 = vpop.f32.mrf.mxu0
    %v253 = vadd.f32 0.0, %v252
    %254 = vdwg.mxu0
    %v269 = vrot.slane %v214, 7
    %v270 = vrot.slane %v217, 7
    %v271 = vrot.slane %v220, 7
    %v272 = vrot.slane %v223, 7
    %v273 = vrot.slane %v226, 7
    %v274 = vrot.slane %v229, 7
    %v275 = vrot.slane %v232, 7
    %v276 = vrot.slane %v235, 7
    %v277 = vrot.slane %v238, 7
    %v278 = vrot.slane %v241, 7
    %v279 = vrot.slane %v244, 7
    %v280 = vrot.slane %v247, 7
    %v281 = vrot.slane %v250, 7
    %v282 = vrot.slane %v253, 7
    %vm297 = vcmask 1040384
    %v298 = vsel %vm297, 0.0, %v269
    %v299 = vsel %vm297, 0.0, %v270
    %v300 = vsel %vm297, 0.0, %v271
    %v301 = vsel %vm297, 0.0, %v272
    %v302 = vsel %vm297, 0.0, %v273
    %v303 = vsel %vm297, 0.0, %v274
    %v304 = vsel %vm297, 0.0, %v275
    %v305 = vsel %vm297, 0.0, %v276
    %v306 = vsel %vm297, 0.0, %v277
    %v307 = vsel %vm297, 0.0, %v278
    %v308 = vsel %vm297, 0.0, %v279
    %v309 = vsel %vm297, 0.0, %v280
    %v310 = vsel %vm297, 0.0, %v281
    %v311 = vsel %vm297, 0.0, %v282
    %v312 = vrot.slane %v214, 1
    %v313 = vrot.slane %v217, 1
    %v314 = vrot.slane %v220, 1
    %v315 = vrot.slane %v223, 1
    %v316 = vrot.slane %v226, 1
    %v317 = vrot.slane %v229, 1
    %v318 = vrot.slane %v232, 1
    %v319 = vrot.slane %v235, 1
    %v320 = vrot.slane %v238, 1
    %v321 = vrot.slane %v241, 1
    %v322 = vrot.slane %v244, 1
    %v323 = vrot.slane %v247, 1
    %v324 = vrot.slane %v250, 1
    %v325 = vrot.slane %v253, 1
    %vm340 = vcmask 1046528
    %v341 = vsel %vm340, %v312, 0.0
    %v342 = vsel %vm340, %v313, 0.0
    %v343 = vsel %vm340, %v314, 0.0
    %v344 = vsel %vm340, %v315, 0.0
    %v345 = vsel %vm340, %v316, 0.0
    %v346 = vsel %vm340, %v317, 0.0
    %v347 = vsel %vm340, %v318, 0.0
    %v348 = vsel %vm340, %v319, 0.0
    %v349 = vsel %vm340, %v320, 0.0
    %v350 = vsel %vm340, %v321, 0.0
    %v351 = vsel %vm340, %v322, 0.0
    %v352 = vsel %vm340, %v323, 0.0
    %v353 = vsel %vm340, %v324, 0.0
    %v354 = vsel %vm340, %v325, 0.0
    %355 = vrot.lane.b32.xlu0 %v214, 32
    %v356 = vpop.permute.xlu0 %355
    %357 = vrot.lane.b32.xlu0 %v217, 32
    %v358 = vpop.permute.xlu0 %357
    %359 = vrot.lane.b32.xlu0 %v220, 32
    %v360 = vpop.permute.xlu0 %359
    %361 = vrot.lane.b32.xlu0 %v223, 32
    %v362 = vpop.permute.xlu0 %361
    %363 = vrot.lane.b32.xlu0 %v226, 32
    %v364 = vpop.permute.xlu0 %363
    %365 = vrot.lane.b32.xlu0 %v229, 32
    %v366 = vpop.permute.xlu0 %365
    %367 = vrot.lane.b32.xlu0 %v232, 32
    %v368 = vpop.permute.xlu0 %367
    %369 = vrot.lane.b32.xlu0 %v235, 32
    %v370 = vpop.permute.xlu0 %369
    %371 = vrot.lane.b32.xlu0 %v238, 32
    %v372 = vpop.permute.xlu0 %371
    %373 = vrot.lane.b32.xlu0 %v241, 32
    %v374 = vpop.permute.xlu0 %373
    %375 = vrot.lane.b32.xlu0 %v244, 32
    %v376 = vpop.permute.xlu0 %375
    %377 = vrot.lane.b32.xlu0 %v247, 32
    %v378 = vpop.permute.xlu0 %377
    %379 = vrot.lane.b32.xlu0 %v250, 32
    %v380 = vpop.permute.xlu0 %379
    %381 = vrot.lane.b32.xlu0 %v253, 32
    %v382 = vpop.permute.xlu0 %381
    %411 = vrot.lane.b32.xlu0 %v341, 64
    %v412 = vpop.permute.xlu0 %411
    %413 = vrot.lane.b32.xlu0 %v342, 64
    %v414 = vpop.permute.xlu0 %413
    %415 = vrot.lane.b32.xlu0 %v343, 64
    %v416 = vpop.permute.xlu0 %415
    %417 = vrot.lane.b32.xlu0 %v344, 64
    %v418 = vpop.permute.xlu0 %417
    %419 = vrot.lane.b32.xlu0 %v345, 64
    %v420 = vpop.permute.xlu0 %419
    %421 = vrot.lane.b32.xlu0 %v346, 64
    %v422 = vpop.permute.xlu0 %421
    %423 = vrot.lane.b32.xlu0 %v347, 64
    %v424 = vpop.permute.xlu0 %423
    %425 = vrot.lane.b32.xlu0 %v348, 64
    %v426 = vpop.permute.xlu0 %425
    %427 = vrot.lane.b32.xlu0 %v349, 64
    %v428 = vpop.permute.xlu0 %427
    %429 = vrot.lane.b32.xlu0 %v350, 64
    %v430 = vpop.permute.xlu0 %429
    %431 = vrot.lane.b32.xlu0 %v351, 64
    %v432 = vpop.permute.xlu0 %431
    %433 = vrot.lane.b32.xlu0 %v352, 64
    %v434 = vpop.permute.xlu0 %433
    %435 = vrot.lane.b32.xlu0 %v353, 64
    %v436 = vpop.permute.xlu0 %435
    %437 = vrot.lane.b32.xlu0 %v354, 64
    %v438 = vpop.permute.xlu0 %437
    %vm453 = vcmask 261120
    %v454 = vsel %vm453, %v298, %v356
    %v455 = vsel %vm453, %v299, %v358
    %v456 = vsel %vm453, %v300, %v360
    %v457 = vsel %vm453, %v301, %v362
    %v458 = vsel %vm453, %v302, %v364
    %v459 = vsel %vm453, %v303, %v366
    %v460 = vsel %vm453, %v304, %v368
    %v461 = vsel %vm453, %v305, %v370
    %v462 = vsel %vm453, %v306, %v372
    %v463 = vsel %vm453, %v307, %v374
    %v464 = vsel %vm453, %v308, %v376
    %v465 = vsel %vm453, %v309, %v378
    %v466 = vsel %vm453, %v310, %v380
    %v467 = vsel %vm453, %v311, %v382
    %vm468 = vcmask 523264
    %v469 = vsel %vm468, %v454, %v412
    %v470 = vsel %vm468, %v455, %v414
    %v471 = vsel %vm468, %v456, %v416
    %v472 = vsel %vm468, %v457, %v418
    %v473 = vsel %vm468, %v458, %v420
    %v474 = vsel %vm468, %v459, %v422
    %v475 = vsel %vm468, %v460, %v424
    %v476 = vsel %vm468, %v461, %v426
    %v477 = vsel %vm468, %v462, %v428
    %v478 = vsel %vm468, %v463, %v430
    %v479 = vsel %vm468, %v464, %v432
    %v480 = vsel %vm468, %v465, %v434
    %v481 = vsel %vm468, %v466, %v436
    %v482 = vsel %vm468, %v467, %v438
    %v483 = vld [vmem:[%s2] sm:$0xff]
    %v484 = vld [vmem:[%s2 + $0x8] sm:$0xff]
    %v485 = vld [vmem:[%s2 + $0x10] sm:$0xff]
    %v486 = vld [vmem:[%s2 + $0x18] sm:$0xff]
    %v487 = vld [vmem:[%s2 + $0x20] sm:$0xff]
    %v488 = vld [vmem:[%s2 + $0x28] sm:$0xff]
    %v489 = vld [vmem:[%s2 + $0x30] sm:$0xff]
    %v490 = vld [vmem:[%s2 + $0x38] sm:$0xff]
    %v491 = vld [vmem:[%s2 + $0x40] sm:$0xff]
    %v492 = vld [vmem:[%s2 + $0x48] sm:$0xff]
    %v493 = vld [vmem:[%s2 + $0x50] sm:$0xff]
    %v494 = vld [vmem:[%s2 + $0x58] sm:$0xff]
    %v495 = vld [vmem:[%s3] sm:$0x1]
    %v497 = vperm.slane %v495, 0
    %vm499 = vcmask 785408
    %v501 = vsel %vm499, %v469, 0
    %v504 = vsel %vm499, %v470, 0
    %v507 = vsel %vm499, %v471, 0
    %v510 = vsel %vm499, %v472, 0
    %v513 = vsel %vm499, %v473, 0
    %v516 = vsel %vm499, %v474, 0
    %v519 = vsel %vm499, %v475, 0
    %v522 = vsel %vm499, %v476, 0
    %v525 = vsel %vm499, %v477, 0
    %v528 = vsel %vm499, %v478, 0
    %v531 = vsel %vm499, %v479, 0
    %v534 = vsel %vm499, %v480, 0
    %v537 = vsel %vm499, %v481, 0
    %v540 = vsel %vm499, %v482, 0
    %542 = vmatpush.msra.mxu0 0.0
    %543 = vmatpush.msra.mxu0 0.0
    %544 = vmatpush.msra.mxu0 0.0
    %545 = vmatpush.msra.mxu0 0.0
    %546 = vmatpush.msra.mxu0 %v494
    %547 = vmatpush.msra.mxu0 %v493
    %548 = vmatpush.msra.mxu0 %v492
    %549 = vmatpush.msra.mxu0 %v491
    %550 = vmatpush.msra.mxu0 %v490
    %551 = vmatpush.msra.mxu0 %v489
    %552 = vmatpush.msra.mxu0 %v488
    %553 = vmatpush.msra.mxu0 %v487
    %554 = vmatpush.msra.mxu0 %v486
    %555 = vmatpush.msra.mxu0 %v485
    %556 = vmatpush.msra.mxu0 %v484
    %557 = vmatpush.msra.mxu0 %v483
    %558 = vmatmul.f32.gmra.mxu0 %v501
    %v559 = vpop.f32.mrf.mxu0
    %v560 = vadd.f32 %v497, %v559
    %561 = vmatmul.f32.gmra.mxu0 %v504
    %v562 = vpop.f32.mrf.mxu0
    %v563 = vadd.f32 %v497, %v562
    %564 = vmatmul.f32.gmra.mxu0 %v507
    %v565 = vpop.f32.mrf.mxu0
    %v566 = vadd.f32 %v497, %v565
    %567 = vmatmul.f32.gmra.mxu0 %v510
    %v568 = vpop.f32.mrf.mxu0
    %v569 = vadd.f32 %v497, %v568
    %570 = vmatmul.f32.gmra.mxu0 %v513
    %v571 = vpop.f32.mrf.mxu0
    %v572 = vadd.f32 %v497, %v571
    %573 = vmatmul.f32.gmra.mxu0 %v516
    %v574 = vpop.f32.mrf.mxu0
    %v575 = vadd.f32 %v497, %v574
    %576 = vmatmul.f32.gmra.mxu0 %v519
    %v577 = vpop.f32.mrf.mxu0
    %v578 = vadd.f32 %v497, %v577
    %579 = vmatmul.f32.gmra.mxu0 %v522
    %v580 = vpop.f32.mrf.mxu0
    %v581 = vadd.f32 %v497, %v580
    %582 = vmatmul.f32.gmra.mxu0 %v525
    %v583 = vpop.f32.mrf.mxu0
    %v584 = vadd.f32 %v497, %v583
    %585 = vmatmul.f32.gmra.mxu0 %v528
    %v586 = vpop.f32.mrf.mxu0
    %v587 = vadd.f32 %v497, %v586
    %588 = vmatmul.f32.gmra.mxu0 %v531
    %v589 = vpop.f32.mrf.mxu0
    %v590 = vadd.f32 %v497, %v589
    %591 = vmatmul.f32.gmra.mxu0 %v534
    %v592 = vpop.f32.mrf.mxu0
    %v593 = vadd.f32 %v497, %v592
    %594 = vmatmul.f32.gmra.mxu0 %v537
    %v595 = vpop.f32.mrf.mxu0
    %v596 = vadd.f32 %v497, %v595
    %597 = vmatmul.f32.gmra.mxu0 %v540
    %v598 = vpop.f32.mrf.mxu0
    %v599 = vadd.f32 %v497, %v598
    %600 = vdwg.mxu0
    %v601 = vmax.f32 %v560, 0.0
    %v602 = vmax.f32 %v563, 0.0
    %v603 = vmax.f32 %v566, 0.0
    %v604 = vmax.f32 %v569, 0.0
    %v605 = vmax.f32 %v572, 0.0
    %v606 = vmax.f32 %v575, 0.0
    %v607 = vmax.f32 %v578, 0.0
    %v608 = vmax.f32 %v581, 0.0
    %v609 = vmax.f32 %v584, 0.0
    %v610 = vmax.f32 %v587, 0.0
    %v611 = vmax.f32 %v590, 0.0
    %v612 = vmax.f32 %v593, 0.0
    %v613 = vmax.f32 %v596, 0.0
    %v614 = vmax.f32 %v599, 0.0
    %v615 = vld [vmem:[%s4] sm:$0xff]
    %v616 = vld [vmem:[%s4 + $0x8] sm:$0xff]
    %v617 = vld [vmem:[%s5] sm:$0x1]
    %v619 = vperm.slane %v617, 0
    %vm621 = vcmask 130048
    %v623 = vsel %vm621, %v601, 0
    %v626 = vsel %vm621, %v602, 0
    %v629 = vsel %vm621, %v603, 0
    %v632 = vsel %vm621, %v604, 0
    %v635 = vsel %vm621, %v605, 0
    %v638 = vsel %vm621, %v606, 0
    %v641 = vsel %vm621, %v607, 0
    %v644 = vsel %vm621, %v608, 0
    %v647 = vsel %vm621, %v609, 0
    %v650 = vsel %vm621, %v610, 0
    %v653 = vsel %vm621, %v611, 0
    %v656 = vsel %vm621, %v612, 0
    %v659 = vsel %vm621, %v613, 0
    %v662 = vsel %vm621, %v614, 0
    %664 = vmatpush.msra.mxu0 0.0
    %665 = vmatpush.msra.mxu0 0.0
    %666 = vmatpush.msra.mxu0 0.0
    %667 = vmatpush.msra.mxu0 0.0
    %668 = vmatpush.msra.mxu0 0.0
    %669 = vmatpush.msra.mxu0 0.0
    %670 = vmatpush.msra.mxu0 0.0
    %671 = vmatpush.msra.mxu0 0.0
    %672 = vmatpush.msra.mxu0 0.0
    %673 = vmatpush.msra.mxu0 0.0
    %674 = vmatpush.msra.mxu0 0.0
    %675 = vmatpush.msra.mxu0 0.0
    %676 = vmatpush.msra.mxu0 0.0
    %677 = vmatpush.msra.mxu0 0.0
    %678 = vmatpush.msra.mxu0 %v616
    %679 = vmatpush.msra.mxu0 %v615
    %680 = vmatmul.f32.gmra.mxu0 %v623
    %v681 = vpop.f32.mrf.mxu0
    %v682 = vadd.f32 %v619, %v681
    %683 = vmatmul.f32.gmra.mxu0 %v626
    %v684 = vpop.f32.mrf.mxu0
    %v685 = vadd.f32 %v619, %v684
    %686 = vmatmul.f32.gmra.mxu0 %v629
    %v687 = vpop.f32.mrf.mxu0
    %v688 = vadd.f32 %v619, %v687
    %689 = vmatmul.f32.gmra.mxu0 %v632
    %v690 = vpop.f32.mrf.mxu0
    %v691 = vadd.f32 %v619, %v690
    %692 = vmatmul.f32.gmra.mxu0 %v635
    %v693 = vpop.f32.mrf.mxu0
    %v694 = vadd.f32 %v619, %v693
    %695 = vmatmul.f32.gmra.mxu0 %v638
    %v696 = vpop.f32.mrf.mxu0
    %v697 = vadd.f32 %v619, %v696
    %698 = vmatmul.f32.gmra.mxu0 %v641
    %v699 = vpop.f32.mrf.mxu0
    %v700 = vadd.f32 %v619, %v699
    %701 = vmatmul.f32.gmra.mxu0 %v644
    %v702 = vpop.f32.mrf.mxu0
    %v703 = vadd.f32 %v619, %v702
    %704 = vmatmul.f32.gmra.mxu0 %v647
    %v705 = vpop.f32.mrf.mxu0
    %v706 = vadd.f32 %v619, %v705
    %707 = vmatmul.f32.gmra.mxu0 %v650
    %v708 = vpop.f32.mrf.mxu0
    %v709 = vadd.f32 %v619, %v708
    %710 = vmatmul.f32.gmra.mxu0 %v653
    %v711 = vpop.f32.mrf.mxu0
    %v712 = vadd.f32 %v619, %v711
    %713 = vmatmul.f32.gmra.mxu0 %v656
    %v714 = vpop.f32.mrf.mxu0
    %v715 = vadd.f32 %v619, %v714
    %716 = vmatmul.f32.gmra.mxu0 %v659
    %v717 = vpop.f32.mrf.mxu0
    %v718 = vadd.f32 %v619, %v717
    %719 = vmatmul.f32.gmra.mxu0 %v662
    %v720 = vpop.f32.mrf.mxu0
    %v721 = vadd.f32 %v619, %v720
    %722 = vdwg.mxu0
    %v723 = vtanh.pop %v682
    %v724 = vtanh.pop %v685
    %v725 = vtanh.pop %v688
    %v726 = vtanh.pop %v691
    %v727 = vtanh.pop %v694
    %v728 = vtanh.pop %v697
    %v729 = vtanh.pop %v700
    %v730 = vtanh.pop %v703
    %v731 = vtanh.pop %v706
    %v732 = vtanh.pop %v709
    %v733 = vtanh.pop %v712
    %v734 = vtanh.pop %v715
    %v735 = vtanh.pop %v718
    %v736 = vtanh.pop %v721
    %v737 = vld [vmem:[%s6] sm:$0x1]
    %v739 = vperm.slane %v737, 0
    %v741 = vmul.f32 %v723, %v739
    %v742 = vmul.f32 %v724, %v739
    %v743 = vmul.f32 %v725, %v739
    %v744 = vmul.f32 %v726, %v739
    %v745 = vmul.f32 %v727, %v739
    %v746 = vmul.f32 %v728, %v739
    %v747 = vmul.f32 %v729, %v739
    %v748 = vmul.f32 %v730, %v739
    %v749 = vmul.f32 %v731, %v739
    %v750 = vmul.f32 %v732, %v739
    %v751 = vmul.f32 %v733, %v739
    %v752 = vmul.f32 %v734, %v739
    %v753 = vmul.f32 %v735, %v739
    %v754 = vmul.f32 %v736, %v739
    %v755 = vsel %vm621, %v741, 0.0
    %756 = vadd.xlane.f32.xlu0 %v755
    %v757 = vpop.xlane.xlu0 %756
    %v758 = vsel %vm621, %v742, 0.0
    %759 = vadd.xlane.f32.xlu0 %v758
    %v760 = vpop.xlane.xlu0 %759
    %v761 = vsel %vm621, %v743, 0.0
    %762 = vadd.xlane.f32.xlu0 %v761
    %v763 = vpop.xlane.xlu0 %762
    %v764 = vsel %vm621, %v744, 0.0
    %765 = vadd.xlane.f32.xlu0 %v764
    %v766 = vpop.xlane.xlu0 %765
    %v767 = vsel %vm621, %v745, 0.0
    %768 = vadd.xlane.f32.xlu0 %v767
    %v769 = vpop.xlane.xlu0 %768
    %v770 = vsel %vm621, %v746, 0.0
    %771 = vadd.xlane.f32.xlu0 %v770
    %v772 = vpop.xlane.xlu0 %771
    %v773 = vsel %vm621, %v747, 0.0
    %774 = vadd.xlane.f32.xlu0 %v773
    %v775 = vpop.xlane.xlu0 %774
    %v776 = vsel %vm621, %v748, 0.0
    %777 = vadd.xlane.f32.xlu0 %v776
    %v778 = vpop.xlane.xlu0 %777
    %v779 = vsel %vm621, %v749, 0.0
    %780 = vadd.xlane.f32.xlu0 %v779
    %v781 = vpop.xlane.xlu0 %780
    %v782 = vsel %vm621, %v750, 0.0
    %783 = vadd.xlane.f32.xlu0 %v782
    %v784 = vpop.xlane.xlu0 %783
    %v785 = vsel %vm621, %v751, 0.0
    %786 = vadd.xlane.f32.xlu0 %v785
    %v787 = vpop.xlane.xlu0 %786
    %v788 = vsel %vm621, %v752, 0.0
    %789 = vadd.xlane.f32.xlu0 %v788
    %v790 = vpop.xlane.xlu0 %789
    %v791 = vsel %vm621, %v753, 0.0
    %792 = vadd.xlane.f32.xlu0 %v791
    %v793 = vpop.xlane.xlu0 %792
    %v794 = vsel %vm621, %v754, 0.0
    %795 = vadd.xlane.f32.xlu0 %v794
    %v796 = vpop.xlane.xlu0 %795
    %v811 = vperm.slane %v757, %v51
    %v812 = vperm.slane %v760, %v51
    %v813 = vperm.slane %v763, %v51
    %v814 = vperm.slane %v766, %v51
    %v815 = vperm.slane %v769, %v51
    %v816 = vperm.slane %v772, %v51
    %v817 = vperm.slane %v775, %v51
    %v818 = vperm.slane %v778, %v51
    %v819 = vperm.slane %v781, %v51
    %v820 = vperm.slane %v784, %v51
    %v821 = vperm.slane %v787, %v51
    %v822 = vperm.slane %v790, %v51
    %v823 = vperm.slane %v793, %v51
    %v824 = vperm.slane %v796, %v51
    %vm825 = vcmask 1041409
    %v826 = vsel %vm825, %v812, %v811
    %vm827 = vcmask 1042434
    %v828 = vsel %vm827, %v813, %v826
    %vm829 = vcmask 1043459
    %v830 = vsel %vm829, %v814, %v828
    %vm831 = vcmask 1044484
    %v832 = vsel %vm831, %v815, %v830
    %vm833 = vcmask 1045509
    %v834 = vsel %vm833, %v816, %v832
    %vm835 = vcmask 1046534
    %v836 = vsel %vm835, %v817, %v834
    %vm837 = vcmask 1047559
    %v838 = vsel %vm837, %v818, %v836
    %v839 = vsel %vm825, %v820, %v819
    %v840 = vsel %vm827, %v821, %v839
    %v841 = vsel %vm829, %v822, %v840
    %v842 = vsel %vm831, %v823, %v841
    %v843 = vsel %vm833, %v824, %v842
    %vm846 = vcmask 64512
    %v847 = vsel %vm846, %v838, -inf
    %848 = vmax.xlane.f32.xlu0 %v847
    %v849 = vpop.xlane.xlu0 %848
    %vm850 = vcmask 62464
    %v851 = vsel %vm850, %v843, -inf
    %852 = vmax.xlane.f32.xlu0 %v851
    %v853 = vpop.xlane.xlu0 %852
    %v856 = vperm.slane %v849, 0
    %v857 = vperm.slane %v849, 1
    %v858 = vperm.slane %v849, 2
    %v859 = vperm.slane %v849, 3
    %v860 = vperm.slane %v849, 4
    %v861 = vperm.slane %v849, 5
    %v862 = vperm.slane %v849, 6
    %v863 = vperm.slane %v849, 7
    %v864 = vperm.slane %v853, 0
    %v865 = vperm.slane %v853, 1
    %v866 = vperm.slane %v853, 2
    %v867 = vperm.slane %v853, 3
    %v868 = vperm.slane %v853, 4
    %v869 = vperm.slane %v853, 5
    %v884 = vsub.f32 %v757, %v856
    %v885 = vsub.f32 %v760, %v857
    %v886 = vsub.f32 %v763, %v858
    %v887 = vsub.f32 %v766, %v859
    %v888 = vsub.f32 %v769, %v860
    %v889 = vsub.f32 %v772, %v861
    %v890 = vsub.f32 %v775, %v862
    %v891 = vsub.f32 %v778, %v863
    %v892 = vsub.f32 %v781, %v864
    %v893 = vsub.f32 %v784, %v865
    %v894 = vsub.f32 %v787, %v866
    %v895 = vsub.f32 %v790, %v867
    %v896 = vsub.f32 %v793, %v868
    %v897 = vsub.f32 %v796, %v869
    %v898 = vmul.f32 %v884, 1.442695
    %v899 = vpow.pop %v898
    %v900 = vmul.f32 %v885, 1.442695
    %v901 = vpow.pop %v900
    %v902 = vmul.f32 %v886, 1.442695
    %v903 = vpow.pop %v902
    %v904 = vmul.f32 %v887, 1.442695
    %v905 = vpow.pop %v904
    %v906 = vmul.f32 %v888, 1.442695
    %v907 = vpow.pop %v906
    %v908 = vmul.f32 %v889, 1.442695
    %v909 = vpow.pop %v908
    %v910 = vmul.f32 %v890, 1.442695
    %v911 = vpow.pop %v910
    %v912 = vmul.f32 %v891, 1.442695
    %v913 = vpow.pop %v912
    %v914 = vmul.f32 %v892, 1.442695
    %v915 = vpow.pop %v914
    %v916 = vmul.f32 %v893, 1.442695
    %v917 = vpow.pop %v916
    %v918 = vmul.f32 %v894, 1.442695
    %v919 = vpow.pop %v918
    %v920 = vmul.f32 %v895, 1.442695
    %v921 = vpow.pop %v920
    %v922 = vmul.f32 %v896, 1.442695
    %v923 = vpow.pop %v922
    %v924 = vmul.f32 %v897, 1.442695
    %v925 = vpow.pop %v924
    %940 = vset.pattern.permute.xlu0 0
    %941 = vperm.xlu0 %940, %v899
    %v942 = vpop.permute.xlu0 %941
    %943 = vset.pattern.permute.xlu0 0
    %944 = vperm.xlu0 %943, %v901
    %v945 = vpop.permute.xlu0 %944
    %946 = vset.pattern.permute.xlu0 0
    %947 = vperm.xlu0 %946, %v903
    %v948 = vpop.permute.xlu0 %947
    %949 = vset.pattern.permute.xlu0 0
    %950 = vperm.xlu0 %949, %v905
    %v951 = vpop.permute.xlu0 %950
    %952 = vset.pattern.permute.xlu0 0
    %953 = vperm.xlu0 %952, %v907
    %v954 = vpop.permute.xlu0 %953
    %955 = vset.pattern.permute.xlu0 0
    %956 = vperm.xlu0 %955, %v909
    %v957 = vpop.permute.xlu0 %956
    %958 = vset.pattern.permute.xlu0 0
    %959 = vperm.xlu0 %958, %v911
    %v960 = vpop.permute.xlu0 %959
    %961 = vset.pattern.permute.xlu0 0
    %962 = vperm.xlu0 %961, %v913
    %v963 = vpop.permute.xlu0 %962
    %964 = vset.pattern.permute.xlu0 0
    %965 = vperm.xlu0 %964, %v915
    %v966 = vpop.permute.xlu0 %965
    %967 = vset.pattern.permute.xlu0 0
    %968 = vperm.xlu0 %967, %v917
    %v969 = vpop.permute.xlu0 %968
    %970 = vset.pattern.permute.xlu0 0
    %971 = vperm.xlu0 %970, %v919
    %v972 = vpop.permute.xlu0 %971
    %973 = vset.pattern.permute.xlu0 0
    %974 = vperm.xlu0 %973, %v921
    %v975 = vpop.permute.xlu0 %974
    %976 = vset.pattern.permute.xlu0 0
    %977 = vperm.xlu0 %976, %v923
    %v978 = vpop.permute.xlu0 %977
    %979 = vset.pattern.permute.xlu0 0
    %980 = vperm.xlu0 %979, %v925
    %v981 = vpop.permute.xlu0 %980
    %v982 = vperm.slane %v942, %v51
    %v983 = vperm.slane %v945, %v51
    %v984 = vperm.slane %v948, %v51
    %v985 = vperm.slane %v951, %v51
    %v986 = vperm.slane %v954, %v51
    %v987 = vperm.slane %v957, %v51
    %v988 = vperm.slane %v960, %v51
    %v989 = vperm.slane %v963, %v51
    %v990 = vperm.slane %v966, %v51
    %v991 = vperm.slane %v969, %v51
    %v992 = vperm.slane %v972, %v51
    %v993 = vperm.slane %v975, %v51
    %v994 = vperm.slane %v978, %v51
    %v995 = vperm.slane %v981, %v51
    %v996 = vsel %vm825, %v983, %v982
    %v997 = vsel %vm827, %v984, %v996
    %v998 = vsel %vm829, %v985, %v997
    %v999 = vsel %vm831, %v986, %v998
    %v1000 = vsel %vm833, %v987, %v999
    %v1001 = vsel %vm835, %v988, %v1000
    %v1002 = vsel %vm837, %v989, %v1001
    %v1003 = vsel %vm825, %v991, %v990
    %v1004 = vsel %vm827, %v992, %v1003
    %v1005 = vsel %vm829, %v993, %v1004
    %v1006 = vsel %vm831, %v994, %v1005
    %v1007 = vsel %vm833, %v995, %v1006
    %v1010 = vsel %vm846, %v1002, 0.0
    %1011 = vadd.xlane.f32.xlu0 %v1010
    %v1012 = vpop.xlane.xlu0 %1011
    %v1013 = vsel %vm850, %v1007, 0.0
    %1014 = vadd.xlane.f32.xlu0 %v1013
    %v1015 = vpop.xlane.xlu0 %1014
    %v1016 = vrcp.pop %v1012
    %v1017 = vrcp.pop %v1015
    %v1020 = vperm.slane %v1016, 0
    %v1021 = vperm.slane %v1016, 1
    %v1022 = vperm.slane %v1016, 2
    %v1023 = vperm.slane %v1016, 3
    %v1024 = vperm.slane %v1016, 4
    %v1025 = vperm.slane %v1016, 5
    %v1026 = vperm.slane %v1016, 6
    %v1027 = vperm.slane %v1016, 7
    %v1028 = vperm.slane %v1017, 0
    %v1029 = vperm.slane %v1017, 1
    %v1030 = vperm.slane %v1017, 2
    %v1031 = vperm.slane %v1017, 3
    %v1032 = vperm.slane %v1017, 4
    %v1033 = vperm.slane %v1017, 5
    %v1048 = vmul.f32 %v899, %v1020
    %v1049 = vmul.f32 %v901, %v1021
    %v1050 = vmul.f32 %v903, %v1022
    %v1051 = vmul.f32 %v905, %v1023
    %v1052 = vmul.f32 %v907, %v1024
    %v1053 = vmul.f32 %v909, %v1025
    %v1054 = vmul.f32 %v911, %v1026
    %v1055 = vmul.f32 %v913, %v1027
    %v1056 = vmul.f32 %v915, %v1028
    %v1057 = vmul.f32 %v917, %v1029
    %v1058 = vmul.f32 %v919, %v1030
    %v1059 = vmul.f32 %v921, %v1031
    %v1060 = vmul.f32 %v923, %v1032
    %v1061 = vmul.f32 %v925, %v1033
    %1063 = vset.pattern.permute.xlu0 0
    %1064 = vperm.xlu0 %1063, %v1048
    %v1065 = vpop.permute.xlu0 %1064
    %v1066 = vperm.slane %v1065, %v51
    %v1067 = vsel %vm846, %v1066, 0
    %1069 = vmatpush.msra.mxu0 0.0
    %1070 = vmatpush.msra.mxu0 0.0
    %1071 = vmatpush.msra.mxu0 0.0
    %1072 = vmatpush.msra.mxu0 0.0
    %1073 = vmatpush.msra.mxu0 0.0
    %1074 = vmatpush.msra.mxu0 0.0
    %1075 = vmatpush.msra.mxu0 0.0
    %1076 = vmatpush.msra.mxu0 0.0
    %1077 = vmatpush.msra.mxu0 0.0
    %1078 = vmatpush.msra.mxu0 0.0
    %1079 = vmatpush.msra.mxu0 0.0
    %1080 = vmatpush.msra.mxu0 0.0
    %1081 = vmatpush.msra.mxu0 0.0
    %1082 = vmatpush.msra.mxu0 0.0
    %1083 = vmatpush.msra.mxu0 0.0
    %1084 = vmatpush.msra.mxu0 %v601
    %1085 = vmatmul.f32.gmra.mxu0 %v1067
    %v1086 = vpop.f32.mrf.mxu0
    %v1087 = vadd.f32 0.0, %v1086
    %1088 = vdwg.mxu0
    %1090 = vset.pattern.permute.xlu0 0
    %1091 = vperm.xlu0 %1090, %v1049
    %v1092 = vpop.permute.xlu0 %1091
    %v1093 = vperm.slane %v1092, %v51
    %v1094 = vsel %vm846, %v1093, 0
    %1096 = vmatpush.msra.mxu0 0.0
    %1097 = vmatpush.msra.mxu0 0.0
    %1098 = vmatpush.msra.mxu0 0.0
    %1099 = vmatpush.msra.mxu0 0.0
    %1100 = vmatpush.msra.mxu0 0.0
    %1101 = vmatpush.msra.mxu0 0.0
    %1102 = vmatpush.msra.mxu0 0.0
    %1103 = vmatpush.msra.mxu0 0.0
    %1104 = vmatpush.msra.mxu0 0.0
    %1105 = vmatpush.msra.mxu0 0.0
    %1106 = vmatpush.msra.mxu0 0.0
    %1107 = vmatpush.msra.mxu0 0.0
    %1108 = vmatpush.msra.mxu0 0.0
    %1109 = vmatpush.msra.mxu0 0.0
    %1110 = vmatpush.msra.mxu0 0.0
    %1111 = vmatpush.msra.mxu0 %v602
    %1112 = vmatmul.f32.gmra.mxu0 %v1094
    %v1113 = vpop.f32.mrf.mxu0
    %v1114 = vadd.f32 0.0, %v1113
    %1115 = vdwg.mxu0
    %1117 = vset.pattern.permute.xlu0 0
    %1118 = vperm.xlu0 %1117, %v1050
    %v1119 = vpop.permute.xlu0 %1118
    %v1120 = vperm.slane %v1119, %v51
    %v1121 = vsel %vm846, %v1120, 0
    %1123 = vmatpush.msra.mxu0 0.0
    %1124 = vmatpush.msra.mxu0 0.0
    %1125 = vmatpush.msra.mxu0 0.0
    %1126 = vmatpush.msra.mxu0 0.0
    %1127 = vmatpush.msra.mxu0 0.0
    %1128 = vmatpush.msra.mxu0 0.0
    %1129 = vmatpush.msra.mxu0 0.0
    %1130 = vmatpush.msra.mxu0 0.0
    %1131 = vmatpush.msra.mxu0 0.0
    %1132 = vmatpush.msra.mxu0 0.0
    %1133 = vmatpush.msra.mxu0 0.0
    %1134 = vmatpush.msra.mxu0 0.0
    %1135 = vmatpush.msra.mxu0 0.0
    %1136 = vmatpush.msra.mxu0 0.0
    %1137 = vmatpush.msra.mxu0 0.0
    %1138 = vmatpush.msra.mxu0 %v603
    %1139 = vmatmul.f32.gmra.mxu0 %v1121
    %v1140 = vpop.f32.mrf.mxu0
    %v1141 = vadd.f32 0.0, %v1140
    %1142 = vdwg.mxu0
    %1144 = vset.pattern.permute.xlu0 0
    %1145 = vperm.xlu0 %1144, %v1051
    %v1146 = vpop.permute.xlu0 %1145
    %v1147 = vperm.slane %v1146, %v51
    %v1148 = vsel %vm846, %v1147, 0
    %1150 = vmatpush.msra.mxu0 0.0
    %1151 = vmatpush.msra.mxu0 0.0
    %1152 = vmatpush.msra.mxu0 0.0
    %1153 = vmatpush.msra.mxu0 0.0
    %1154 = vmatpush.msra.mxu0 0.0
    %1155 = vmatpush.msra.mxu0 0.0
    %1156 = vmatpush.msra.mxu0 0.0
    %1157 = vmatpush.msra.mxu0 0.0
    %1158 = vmatpush.msra.mxu0 0.0
    %1159 = vmatpush.msra.mxu0 0.0
    %1160 = vmatpush.msra.mxu0 0.0
    %1161 = vmatpush.msra.mxu0 0.0
    %1162 = vmatpush.msra.mxu0 0.0
    %1163 = vmatpush.msra.mxu0 0.0
    %1164 = vmatpush.msra.mxu0 0.0
    %1165 = vmatpush.msra.mxu0 %v604
    %1166 = vmatmul.f32.gmra.mxu0 %v1148
    %v1167 = vpop.f32.mrf.mxu0
    %v1168 = vadd.f32 0.0, %v1167
    %1169 = vdwg.mxu0
    %1171 = vset.pattern.permute.xlu0 0
    %1172 = vperm.xlu0 %1171, %v1052
    %v1173 = vpop.permute.xlu0 %1172
    %v1174 = vperm.slane %v1173, %v51
    %v1175 = vsel %vm846, %v1174, 0
    %1177 = vmatpush.msra.mxu0 0.0
    %1178 = vmatpush.msra.mxu0 0.0
    %1179 = vmatpush.msra.mxu0 0.0
    %1180 = vmatpush.msra.mxu0 0.0
    %1181 = vmatpush.msra.mxu0 0.0
    %1182 = vmatpush.msra.mxu0 0.0
    %1183 = vmatpush.msra.mxu0 0.0
    %1184 = vmatpush.msra.mxu0 0.0
    %1185 = vmatpush.msra.mxu0 0.0
    %1186 = vmatpush.msra.mxu0 0.0
    %1187 = vmatpush.msra.mxu0 0.0
    %1188 = vmatpush.msra.mxu0 0.0
    %1189 = vmatpush.msra.mxu0 0.0
    %1190 = vmatpush.msra.mxu0 0.0
    %1191 = vmatpush.msra.mxu0 0.0
    %1192 = vmatpush.msra.mxu0 %v605
    %1193 = vmatmul.f32.gmra.mxu0 %v1175
    %v1194 = vpop.f32.mrf.mxu0
    %v1195 = vadd.f32 0.0, %v1194
    %1196 = vdwg.mxu0
    %1198 = vset.pattern.permute.xlu0 0
    %1199 = vperm.xlu0 %1198, %v1053
    %v1200 = vpop.permute.xlu0 %1199
    %v1201 = vperm.slane %v1200, %v51
    %v1202 = vsel %vm846, %v1201, 0
    %1204 = vmatpush.msra.mxu0 0.0
    %1205 = vmatpush.msra.mxu0 0.0
    %1206 = vmatpush.msra.mxu0 0.0
    %1207 = vmatpush.msra.mxu0 0.0
    %1208 = vmatpush.msra.mxu0 0.0
    %1209 = vmatpush.msra.mxu0 0.0
    %1210 = vmatpush.msra.mxu0 0.0
    %1211 = vmatpush.msra.mxu0 0.0
    %1212 = vmatpush.msra.mxu0 0.0
    %1213 = vmatpush.msra.mxu0 0.0
    %1214 = vmatpush.msra.mxu0 0.0
    %1215 = vmatpush.msra.mxu0 0.0
    %1216 = vmatpush.msra.mxu0 0.0
    %1217 = vmatpush.msra.mxu0 0.0
    %1218 = vmatpush.msra.mxu0 0.0
    %1219 = vmatpush.msra.mxu0 %v606
    %1220 = vmatmul.f32.gmra.mxu0 %v1202
    %v1221 = vpop.f32.mrf.mxu0
    %v1222 = vadd.f32 0.0, %v1221
    %1223 = vdwg.mxu0
    %1225 = vset.pattern.permute.xlu0 0
    %1226 = vperm.xlu0 %1225, %v1054
    %v1227 = vpop.permute.xlu0 %1226
    %v1228 = vperm.slane %v1227, %v51
    %v1229 = vsel %vm846, %v1228, 0
    %1231 = vmatpush.msra.mxu0 0.0
    %1232 = vmatpush.msra.mxu0 0.0
    %1233 = vmatpush.msra.mxu0 0.0
    %1234 = vmatpush.msra.mxu0 0.0
    %1235 = vmatpush.msra.mxu0 0.0
    %1236 = vmatpush.msra.mxu0 0.0
    %1237 = vmatpush.msra.mxu0 0.0
    %1238 = vmatpush.msra.mxu0 0.0
    %1239 = vmatpush.msra.mxu0 0.0
    %1240 = vmatpush.msra.mxu0 0.0
    %1241 = vmatpush.msra.mxu0 0.0
    %1242 = vmatpush.msra.mxu0 0.0
    %1243 = vmatpush.msra.mxu0 0.0
    %1244 = vmatpush.msra.mxu0 0.0
    %1245 = vmatpush.msra.mxu0 0.0
    %1246 = vmatpush.msra.mxu0 %v607
    %1247 = vmatmul.f32.gmra.mxu0 %v1229
    %v1248 = vpop.f32.mrf.mxu0
    %v1249 = vadd.f32 0.0, %v1248
    %1250 = vdwg.mxu0
    %1252 = vset.pattern.permute.xlu0 0
    %1253 = vperm.xlu0 %1252, %v1055
    %v1254 = vpop.permute.xlu0 %1253
    %v1255 = vperm.slane %v1254, %v51
    %v1256 = vsel %vm846, %v1255, 0
    %1258 = vmatpush.msra.mxu0 0.0
    %1259 = vmatpush.msra.mxu0 0.0
    %1260 = vmatpush.msra.mxu0 0.0
    %1261 = vmatpush.msra.mxu0 0.0
    %1262 = vmatpush.msra.mxu0 0.0
    %1263 = vmatpush.msra.mxu0 0.0
    %1264 = vmatpush.msra.mxu0 0.0
    %1265 = vmatpush.msra.mxu0 0.0
    %1266 = vmatpush.msra.mxu0 0.0
    %1267 = vmatpush.msra.mxu0 0.0
    %1268 = vmatpush.msra.mxu0 0.0
    %1269 = vmatpush.msra.mxu0 0.0
    %1270 = vmatpush.msra.mxu0 0.0
    %1271 = vmatpush.msra.mxu0 0.0
    %1272 = vmatpush.msra.mxu0 0.0
    %1273 = vmatpush.msra.mxu0 %v608
    %1274 = vmatmul.f32.gmra.mxu0 %v1256
    %v1275 = vpop.f32.mrf.mxu0
    %v1276 = vadd.f32 0.0, %v1275
    %1277 = vdwg.mxu0
    %1279 = vset.pattern.permute.xlu0 0
    %1280 = vperm.xlu0 %1279, %v1056
    %v1281 = vpop.permute.xlu0 %1280
    %v1282 = vperm.slane %v1281, %v51
    %v1283 = vsel %vm846, %v1282, 0
    %1285 = vmatpush.msra.mxu0 0.0
    %1286 = vmatpush.msra.mxu0 0.0
    %1287 = vmatpush.msra.mxu0 0.0
    %1288 = vmatpush.msra.mxu0 0.0
    %1289 = vmatpush.msra.mxu0 0.0
    %1290 = vmatpush.msra.mxu0 0.0
    %1291 = vmatpush.msra.mxu0 0.0
    %1292 = vmatpush.msra.mxu0 0.0
    %1293 = vmatpush.msra.mxu0 0.0
    %1294 = vmatpush.msra.mxu0 0.0
    %1295 = vmatpush.msra.mxu0 0.0
    %1296 = vmatpush.msra.mxu0 0.0
    %1297 = vmatpush.msra.mxu0 0.0
    %1298 = vmatpush.msra.mxu0 0.0
    %1299 = vmatpush.msra.mxu0 0.0
    %1300 = vmatpush.msra.mxu0 %v609
    %1301 = vmatmul.f32.gmra.mxu0 %v1283
    %v1302 = vpop.f32.mrf.mxu0
    %v1303 = vadd.f32 0.0, %v1302
    %1304 = vdwg.mxu0
    %1306 = vset.pattern.permute.xlu0 0
    %1307 = vperm.xlu0 %1306, %v1057
    %v1308 = vpop.permute.xlu0 %1307
    %v1309 = vperm.slane %v1308, %v51
    %v1310 = vsel %vm846, %v1309, 0
    %1312 = vmatpush.msra.mxu0 0.0
    %1313 = vmatpush.msra.mxu0 0.0
    %1314 = vmatpush.msra.mxu0 0.0
    %1315 = vmatpush.msra.mxu0 0.0
    %1316 = vmatpush.msra.mxu0 0.0
    %1317 = vmatpush.msra.mxu0 0.0
    %1318 = vmatpush.msra.mxu0 0.0
    %1319 = vmatpush.msra.mxu0 0.0
    %1320 = vmatpush.msra.mxu0 0.0
    %1321 = vmatpush.msra.mxu0 0.0
    %1322 = vmatpush.msra.mxu0 0.0
    %1323 = vmatpush.msra.mxu0 0.0
    %1324 = vmatpush.msra.mxu0 0.0
    %1325 = vmatpush.msra.mxu0 0.0
    %1326 = vmatpush.msra.mxu0 0.0
    %1327 = vmatpush.msra.mxu0 %v610
    %1328 = vmatmul.f32.gmra.mxu0 %v1310
    %v1329 = vpop.f32.mrf.mxu0
    %v1330 = vadd.f32 0.0, %v1329
    %1331 = vdwg.mxu0
    %1333 = vset.pattern.permute.xlu0 0
    %1334 = vperm.xlu0 %1333, %v1058
    %v1335 = vpop.permute.xlu0 %1334
    %v1336 = vperm.slane %v1335, %v51
    %v1337 = vsel %vm846, %v1336, 0
    %1339 = vmatpush.msra.mxu0 0.0
    %1340 = vmatpush.msra.mxu0 0.0
    %1341 = vmatpush.msra.mxu0 0.0
    %1342 = vmatpush.msra.mxu0 0.0
    %1343 = vmatpush.msra.mxu0 0.0
    %1344 = vmatpush.msra.mxu0 0.0
    %1345 = vmatpush.msra.mxu0 0.0
    %1346 = vmatpush.msra.mxu0 0.0
    %1347 = vmatpush.msra.mxu0 0.0
    %1348 = vmatpush.msra.mxu0 0.0
    %1349 = vmatpush.msra.mxu0 0.0
    %1350 = vmatpush.msra.mxu0 0.0
    %1351 = vmatpush.msra.mxu0 0.0
    %1352 = vmatpush.msra.mxu0 0.0
    %1353 = vmatpush.msra.mxu0 0.0
    %1354 = vmatpush.msra.mxu0 %v611
    %1355 = vmatmul.f32.gmra.mxu0 %v1337
    %v1356 = vpop.f32.mrf.mxu0
    %v1357 = vadd.f32 0.0, %v1356
    %1358 = vdwg.mxu0
    %1360 = vset.pattern.permute.xlu0 0
    %1361 = vperm.xlu0 %1360, %v1059
    %v1362 = vpop.permute.xlu0 %1361
    %v1363 = vperm.slane %v1362, %v51
    %v1364 = vsel %vm846, %v1363, 0
    %1366 = vmatpush.msra.mxu0 0.0
    %1367 = vmatpush.msra.mxu0 0.0
    %1368 = vmatpush.msra.mxu0 0.0
    %1369 = vmatpush.msra.mxu0 0.0
    %1370 = vmatpush.msra.mxu0 0.0
    %1371 = vmatpush.msra.mxu0 0.0
    %1372 = vmatpush.msra.mxu0 0.0
    %1373 = vmatpush.msra.mxu0 0.0
    %1374 = vmatpush.msra.mxu0 0.0
    %1375 = vmatpush.msra.mxu0 0.0
    %1376 = vmatpush.msra.mxu0 0.0
    %1377 = vmatpush.msra.mxu0 0.0
    %1378 = vmatpush.msra.mxu0 0.0
    %1379 = vmatpush.msra.mxu0 0.0
    %1380 = vmatpush.msra.mxu0 0.0
    %1381 = vmatpush.msra.mxu0 %v612
    %1382 = vmatmul.f32.gmra.mxu0 %v1364
    %v1383 = vpop.f32.mrf.mxu0
    %v1384 = vadd.f32 0.0, %v1383
    %1385 = vdwg.mxu0
    %1387 = vset.pattern.permute.xlu0 0
    %1388 = vperm.xlu0 %1387, %v1060
    %v1389 = vpop.permute.xlu0 %1388
    %v1390 = vperm.slane %v1389, %v51
    %v1391 = vsel %vm846, %v1390, 0
    %1393 = vmatpush.msra.mxu0 0.0
    %1394 = vmatpush.msra.mxu0 0.0
    %1395 = vmatpush.msra.mxu0 0.0
    %1396 = vmatpush.msra.mxu0 0.0
    %1397 = vmatpush.msra.mxu0 0.0
    %1398 = vmatpush.msra.mxu0 0.0
    %1399 = vmatpush.msra.mxu0 0.0
    %1400 = vmatpush.msra.mxu0 0.0
    %1401 = vmatpush.msra.mxu0 0.0
    %1402 = vmatpush.msra.mxu0 0.0
    %1403 = vmatpush.msra.mxu0 0.0
    %1404 = vmatpush.msra.mxu0 0.0
    %1405 = vmatpush.msra.mxu0 0.0
    %1406 = vmatpush.msra.mxu0 0.0
    %1407 = vmatpush.msra.mxu0 0.0
    %1408 = vmatpush.msra.mxu0 %v613
    %1409 = vmatmul.f32.gmra.mxu0 %v1391
    %v1410 = vpop.f32.mrf.mxu0
    %v1411 = vadd.f32 0.0, %v1410
    %1412 = vdwg.mxu0
    %1414 = vset.pattern.permute.xlu0 0
    %1415 = vperm.xlu0 %1414, %v1061
    %v1416 = vpop.permute.xlu0 %1415
    %v1417 = vperm.slane %v1416, %v51
    %v1418 = vsel %vm846, %v1417, 0
    %1420 = vmatpush.msra.mxu0 0.0
    %1421 = vmatpush.msra.mxu0 0.0
    %1422 = vmatpush.msra.mxu0 0.0
    %1423 = vmatpush.msra.mxu0 0.0
    %1424 = vmatpush.msra.mxu0 0.0
    %1425 = vmatpush.msra.mxu0 0.0
    %1426 = vmatpush.msra.mxu0 0.0
    %1427 = vmatpush.msra.mxu0 0.0
    %1428 = vmatpush.msra.mxu0 0.0
    %1429 = vmatpush.msra.mxu0 0.0
    %1430 = vmatpush.msra.mxu0 0.0
    %1431 = vmatpush.msra.mxu0 0.0
    %1432 = vmatpush.msra.mxu0 0.0
    %1433 = vmatpush.msra.mxu0 0.0
    %1434 = vmatpush.msra.mxu0 0.0
    %1435 = vmatpush.msra.mxu0 %v614
    %1436 = vmatmul.f32.gmra.mxu0 %v1418
    %v1437 = vpop.f32.mrf.mxu0
    %v1438 = vadd.f32 0.0, %v1437
    %1439 = vdwg.mxu0
    %v1440 = vld [vmem:[%s7] sm:$0xff]
    %v1441 = vld [vmem:[%s7 + $0x8] sm:$0xff]
    %v1442 = vld [vmem:[%s8] sm:$0x1]
    %v1444 = vperm.slane %v1442, 0
    %v1454 = vrot.slane %v1114, 7
    %v1455 = vsel %vm825, %v1454, %v1087
    %v1456 = vrot.slane %v1141, 6
    %v1457 = vsel %vm827, %v1456, %v1455
    %v1458 = vrot.slane %v1168, 5
    %v1459 = vsel %vm829, %v1458, %v1457
    %v1460 = vrot.slane %v1276, 4
    %v1461 = vsel %vm831, %v1460, %v1459
    %v1462 = vrot.slane %v1303, 3
    %v1463 = vsel %vm833, %v1462, %v1461
    %v1464 = vrot.slane %v1330, 2
    %v1465 = vsel %vm835, %v1464, %v1463
    %v1466 = vrot.slane %v1357, 1
    %v1467 = vsel %vm837, %v1466, %v1465
    %v1468 = vsel %vm621, %v1467, 0
    %1470 = vmatpush.msra.mxu0 0.0
    %1471 = vmatpush.msra.mxu0 0.0
    %1472 = vmatpush.msra.mxu0 0.0
    %1473 = vmatpush.msra.mxu0 0.0
    %1474 = vmatpush.msra.mxu0 0.0
    %1475 = vmatpush.msra.mxu0 0.0
    %1476 = vmatpush.msra.mxu0 0.0
    %1477 = vmatpush.msra.mxu0 0.0
    %1478 = vmatpush.msra.mxu0 0.0
    %1479 = vmatpush.msra.mxu0 0.0
    %1480 = vmatpush.msra.mxu0 0.0
    %1481 = vmatpush.msra.mxu0 0.0
    %1482 = vmatpush.msra.mxu0 0.0
    %1483 = vmatpush.msra.mxu0 0.0
    %1484 = vmatpush.msra.mxu0 %v1441
    %1485 = vmatpush.msra.mxu0 %v1440
    %1486 = vmatmul.f32.gmra.mxu0 %v1468
    %v1487 = vpop.f32.mrf.mxu0
    %v1488 = vadd.f32 %v1444, %v1487
    %1489 = vdwg.mxu0
    %v1490 = vtanh.pop %v1488
    %v1492 = vrot.slane %v1490, 4
    %v1494 = vld [vmem:[%s9] sm:$0x1]
    %v1496 = vperm.slane %v1494, 0
    %v1498 = vmul.f32 %v1490, %v1496
    %v1499 = vmul.f32 %v1492, %v1496
    %vm1500 = vcmask 125952
    %v1501 = vsel %vm1500, %v1498, 0.0
    %1502 = vadd.xlane.f32.xlu0 %v1501
    %v1503 = vpop.xlane.xlu0 %1502
    %v1504 = vsel %vm1500, %v1499, 0.0
    %1505 = vadd.xlane.f32.xlu0 %v1504
    %v1506 = vpop.xlane.xlu0 %1505
    %v1509 = vperm.slane %v1503, %v51
    %v1510 = vperm.slane %v1506, %v51
    %v1511 = vsel %vm825, %v1510, %v1509
    %vm1513 = vcmask 25600
    %v1514 = vsel %vm1513, %v1511, -inf
    %1515 = vmax.xlane.f32.xlu0 %v1514
    %v1516 = vpop.xlane.xlu0 %1515
    %v1518 = vperm.slane %v1516, 0
    %v1519 = vperm.slane %v1516, 1
    %v1522 = vsub.f32 %v1503, %v1518
    %v1523 = vsub.f32 %v1506, %v1519
    %v1524 = vmul.f32 %v1522, 1.442695
    %v1525 = vpow.pop %v1524
    %v1526 = vmul.f32 %v1523, 1.442695
    %v1527 = vpow.pop %v1526
    %1530 = vset.pattern.permute.xlu0 0
    %1531 = vperm.xlu0 %1530, %v1525
    %v1532 = vpop.permute.xlu0 %1531
    %1533 = vset.pattern.permute.xlu0 0
    %1534 = vperm.xlu0 %1533, %v1527
    %v1535 = vpop.permute.xlu0 %1534
    %v1536 = vperm.slane %v1532, %v51
    %v1537 = vperm.slane %v1535, %v51
    %v1538 = vsel %vm825, %v1537, %v1536
    %v1540 = vsel %vm1513, %v1538, 0.0
    %1541 = vadd.xlane.f32.xlu0 %v1540
    %v1542 = vpop.xlane.xlu0 %1541
    %v1543 = vrcp.pop %v1542
    %v1545 = vperm.slane %v1543, 0
    %v1546 = vperm.slane %v1543, 1
    %v1549 = vmul.f32 %v1525, %v1545
    %v1550 = vmul.f32 %v1527, %v1546
    %1552 = vset.pattern.permute.xlu0 0
    %1553 = vperm.xlu0 %1552, %v1549
    %v1554 = vpop.permute.xlu0 %1553
    %v1555 = vperm.slane %v1554, %v51
    %vm1556 = vcmask 31744
    %v1557 = vsel %vm1556, %v1555, 0
    %v1559 = vsel %vm192, %v1459, 0
    %1561 = vmatpush.msra.mxu0 0.0
    %1562 = vmatpush.msra.mxu0 0.0
    %1563 = vmatpush.msra.mxu0 0.0
    %1564 = vmatpush.msra.mxu0 0.0
    %1565 = vmatpush.msra.mxu0 0.0
    %1566 = vmatpush.msra.mxu0 0.0
    %1567 = vmatpush.msra.mxu0 0.0
    %1568 = vmatpush.msra.mxu0 0.0
    %1569 = vmatpush.msra.mxu0 0.0
    %1570 = vmatpush.msra.mxu0 0.0
    %1571 = vmatpush.msra.mxu0 0.0
    %1572 = vmatpush.msra.mxu0 0.0
    %1573 = vmatpush.msra.mxu0 0.0
    %1574 = vmatpush.msra.mxu0 0.0
    %1575 = vmatpush.msra.mxu0 0.0
    %1576 = vmatpush.msra.mxu0 %v1559
    %1577 = vmatmul.f32.gmra.mxu0 %v1557
    %v1578 = vpop.f32.mrf.mxu0
    %v1579 = vadd.f32 0.0, %v1578
    %1580 = vdwg.mxu0
    %1582 = vset.pattern.permute.xlu0 0
    %1583 = vperm.xlu0 %1582, %v1550
    %v1584 = vpop.permute.xlu0 %1583
    %v1585 = vperm.slane %v1584, %v51
    %v1586 = vrot.slane %v1303, 7
    %v1587 = vsel %vm825, %v1586, %v1276
    %v1588 = vrot.slane %v1330, 6
    %v1589 = vsel %vm827, %v1588, %v1587
    %v1590 = vrot.slane %v1357, 5
    %v1591 = vsel %vm829, %v1590, %v1589
    %v1592 = vsel %vm1556, %v1585, 0
    %v1594 = vsel %vm192, %v1591, 0
    %1596 = vmatpush.msra.mxu0 0.0
    %1597 = vmatpush.msra.mxu0 0.0
    %1598 = vmatpush.msra.mxu0 0.0
    %1599 = vmatpush.msra.mxu0 0.0
    %1600 = vmatpush.msra.mxu0 0.0
    %1601 = vmatpush.msra.mxu0 0.0
    %1602 = vmatpush.msra.mxu0 0.0
    %1603 = vmatpush.msra.mxu0 0.0
    %1604 = vmatpush.msra.mxu0 0.0
    %1605 = vmatpush.msra.mxu0 0.0
    %1606 = vmatpush.msra.mxu0 0.0
    %1607 = vmatpush.msra.mxu0 0.0
    %1608 = vmatpush.msra.mxu0 0.0
    %1609 = vmatpush.msra.mxu0 0.0
    %1610 = vmatpush.msra.mxu0 0.0
    %1611 = vmatpush.msra.mxu0 %v1594
    %1612 = vmatmul.f32.gmra.mxu0 %v1592
    %v1613 = vpop.f32.mrf.mxu0
    %v1614 = vadd.f32 0.0, %v1613
    %1615 = vdwg.mxu0
    %v1619 = vrot.slane %v1222, 7
    %v1620 = vsel %vm825, %v1619, %v1195
    %v1621 = vrot.slane %v1249, 6
    %v1622 = vsel %vm827, %v1621, %v1620
    %v1624 = vsel %vm621, %v1579, 0
    %v1626 = vsel %vm621, %v1622, 0
    %1628 = vmatpush.xpose.msra.mxu0 0.0
    %1629 = vmatpush.xpose.msra.mxu0 0.0
    %1630 = vmatpush.xpose.msra.mxu0 0.0
    %1631 = vmatpush.xpose.msra.mxu0 0.0
    %1632 = vmatpush.xpose.msra.mxu0 0.0
    %1633 = vmatpush.xpose.msra.mxu0 0.0
    %1634 = vmatpush.xpose.msra.mxu0 0.0
    %1635 = vmatpush.xpose.msra.mxu0 0.0
    %1636 = vmatpush.xpose.msra.mxu0 0.0
    %1637 = vmatpush.xpose.msra.mxu0 0.0
    %1638 = vmatpush.xpose.msra.mxu0 0.0
    %1639 = vmatpush.xpose.msra.mxu0 0.0
    %1640 = vmatpush.xpose.msra.mxu0 0.0
    %1641 = vmatpush.xpose.msra.mxu0 0.0
    %1642 = vmatpush.xpose.msra.mxu0 0.0
    %1643 = vmatpush.xpose.msra.mxu0 %v1626
    %1644 = vmatmul.f32.gmra.mxu0 %v1624
    %v1645 = vpop.f32.mrf.mxu0
    %v1646 = vadd.f32 0.0, %v1645
    %1647 = vdwg.mxu0
    %v1651 = vrot.slane %v1411, 7
    %v1652 = vsel %vm825, %v1651, %v1384
    %v1653 = vrot.slane %v1438, 6
    %v1654 = vsel %vm827, %v1653, %v1652
    %v1656 = vsel %vm621, %v1614, 0
    %v1658 = vsel %vm621, %v1654, 0
    %1660 = vmatpush.xpose.msra.mxu0 0.0
    %1661 = vmatpush.xpose.msra.mxu0 0.0
    %1662 = vmatpush.xpose.msra.mxu0 0.0
    %1663 = vmatpush.xpose.msra.mxu0 0.0
    %1664 = vmatpush.xpose.msra.mxu0 0.0
    %1665 = vmatpush.xpose.msra.mxu0 0.0
    %1666 = vmatpush.xpose.msra.mxu0 0.0
    %1667 = vmatpush.xpose.msra.mxu0 0.0
    %1668 = vmatpush.xpose.msra.mxu0 0.0
    %1669 = vmatpush.xpose.msra.mxu0 0.0
    %1670 = vmatpush.xpose.msra.mxu0 0.0
    %1671 = vmatpush.xpose.msra.mxu0 0.0
    %1672 = vmatpush.xpose.msra.mxu0 0.0
    %1673 = vmatpush.xpose.msra.mxu0 0.0
    %1674 = vmatpush.xpose.msra.mxu0 0.0
    %1675 = vmatpush.xpose.msra.mxu0 %v1658
    %1676 = vmatmul.f32.gmra.mxu0 %v1656
    %v1677 = vpop.f32.mrf.mxu0
    %v1678 = vadd.f32 0.0, %v1677
    %1679 = vdwg.mxu0
    %v1682 = vrot.slane %v1678, 7
    %v1683 = vsel %vm825, %v1682, %v1646
    %vm1685 = vcmask 17408
    %1686 = vst.msk [vmem:[#allocation2] sm:$0x3] %vm1685, %v1683
    // Predicated region
    $region42: #{tanr_forward.1} parent=1 // pred_check
      _
    $region43: #{tanr_forward.1} parent=1 // pred_check_branch
      %1688 = sbr.rel (0) target = $region45
    $region44: #{tanr_forward.1} parent=1 // pred_region
      %1690 = vsyncadd [#allocation3], 0
      %s1692 = sshll.u32 [#allocation2], 4
      %s1693 = int_to_ptr.vmem [resolvable:$true] %s1692
      %s1694 = sshll.u32 %s10, 4
      %s1695 = int_to_ptr.hbm [resolvable:$true] %s1694
      %1697 = dma.vmem_to_hbm [thread:$0]  %s1693, 32, %s1695, [#allocation3]
    $region45: #{tanr_forward.1} parent=1 // pred_fallthru
      _
    // Predicated region
    $region46: #{tanr_forward.1} parent=1 // pred_check
      _
    $region47: #{tanr_forward.1} parent=1 // pred_check_branch
      %1699 = sbr.rel (0) target = $region49
    $region48: #{tanr_forward.1} parent=1 // pred_region
      %1701 = dma.done [#allocation3], 32
    $region49: #{tanr_forward.1} parent=1 // pred_fallthru
      _
    %1702 = vsyncpa [#allocation3], 1

</llo_original>
